<compile_context>
chip_gen: v5e
topology: v5e:2x2
jax: 0.10.0
libtpu: 0.0.40
codegen_flags: <defaults>
</compile_context>

<pallas_src>
import math
import jax
import jax.numpy as jnp
from jax import lax
from jax.experimental import pallas as pl
from jax.experimental.pallas import tpu as pltpu

H = 32          # hidden dim padded 30 -> 32 (multiple of sublane height 8)
H_RAW = 30
INV_SQRT2 = 0.7071067811865476


def _round_up(x, m):
    return (x + m - 1) // m * m


# ---------------------------------------------------------------------------
# shared-range-reduction sin/cos (cephes single-precision polynomials)
# ---------------------------------------------------------------------------
_TWO_OVER_PI = 0.6366197723675814
_PIO2_HI = 1.5703125                      # pi/2 split, each term exact in f32
_PIO2_MID = 4.837512969970703125e-4
_PIO2_LO = 7.54978995489188216e-8


def _sincos(h):
    """Return (sin(h), cos(h)) sharing one range reduction."""
    kf = jnp.round(h * _TWO_OVER_PI)
    r = h - kf * _PIO2_HI
    r = r - kf * _PIO2_MID
    r = r - kf * _PIO2_LO                 # r in ~[-pi/4, pi/4]
    r2 = r * r
    sin_r = ((-1.9515295891e-4 * r2 + 8.3321608736e-3) * r2
             - 1.6666654611e-1) * r2 * r + r
    cos_r = ((2.443315711809948e-5 * r2 - 1.388731625493765e-3) * r2
             + 4.166664568298827e-2) * (r2 * r2) - 0.5 * r2 + 1.0

    k = kf.astype(jnp.int32)
    swap = (k & 1) == 1                   # odd quadrant -> swap sin/cos
    sin_h = jnp.where(swap, cos_r, sin_r)
    cos_h = jnp.where(swap, sin_r, cos_r)
    sin_h = jnp.where((k & 2) != 0, -sin_h, sin_h)
    cos_h = jnp.where(((k + 1) & 2) != 0, -cos_h, cos_h)
    return sin_h, cos_h


def _gelu_prescaled(u):
    """Exact GELU with the 1/sqrt(2) input scale folded into the weights.

    The producing linear layer was pre-scaled by 1/sqrt(2), so here
    gelu(x) = 0.5*x*(1+erf(x/sqrt(2))) == (x/sqrt(2)) * (1+erf(u)) with u=x/sqrt(2).
    """
    return (INV_SQRT2 * u) * (1.0 + lax.erf(u))
    # TODO(synk): optionally route through tanh-GELU on the idle EUP (changes
    # numerics ~1e-3 vs PyTorch's exact erf GELU, so kept off by default).


# ---------------------------------------------------------------------------
# kernel
# ---------------------------------------------------------------------------
def _mlp_kernel(y_ref,
                w0a_ref, w0b_ref, b0_ref,
                w1s_ref, w1c_ref, b1_ref,
                w2_ref, b2_ref,
                w3_ref, b3_ref,
                w4_ref, b4_ref,
                w5_ref, b5_ref,
                out_ref):
    # Transposed ("batch on lanes") layout: activations are (feature, TILE_N).
    y0 = y_ref[0:1, :]                                        # (1, TN)
    y1 = y_ref[1:2, :]                                        # (1, TN)

    # linear_start (K=2): two rank-1 broadcast FMAs on the VPU, no MXU pass.
    h = w0a_ref[...] * y0 + w0b_ref[...] * y1 + b0_ref[...]   # (H, TN)

    # sin/cos with one shared range reduction (values only, no VMEM round-trip).
    s, c = _sincos(h)

    # linear_middle1: two K=H MXU dots against the pre-split sin/cos halves.
    x = (jnp.dot(w1s_ref[...], s, preferred_element_type=jnp.float32)
         + jnp.dot(w1c_ref[...], c, preferred_element_type=jnp.float32)
         + b1_ref[...])
    x = _gelu_prescaled(x)

    x = _gelu_prescaled(jnp.dot(w2_ref[...], x,
                                preferred_element_type=jnp.float32) + b2_ref[...])
    x = _gelu_prescaled(jnp.dot(w3_ref[...], x,
                                preferred_element_type=jnp.float32) + b3_ref[...])
    x = _gelu_prescaled(jnp.dot(w4_ref[...], x,
                                preferred_element_type=jnp.float32) + b4_ref[...])

    # linear_end on the MXU; output stays lane-dense (1, TN).
    out = jnp.dot(w5_ref[...], x, preferred_element_type=jnp.float32) + b5_ref[...]
    out_ref[...] = out.astype(out_ref.dtype)


# ---------------------------------------------------------------------------
# parameter packing
# ---------------------------------------------------------------------------
def prepare_params(tp):
    """Pad 30 -> 32, split W1 into sin/cos halves, fold GELU's 1/sqrt(2)."""
    z = jnp.zeros

    def pad_col(v, scale=1.0):                        # (30,) -> (H, 1)
        return z((H, 1), jnp.float32).at[:H_RAW, 0].set(
            jnp.asarray(v, jnp.float32) * scale)

    kp = {}
    W0 = jnp.asarray(tp["W0"], jnp.float32)           # (30, 2)
    kp["w0a"] = pad_col(W0[:, 0])
    kp["w0b"] = pad_col(W0[:, 1])
    kp["b0"] = pad_col(tp["b0"])

    # linear_middle1, pre-scaled by 1/sqrt(2) (GELU fold).  Padded cos columns
    # (cos(0)=1 on padded rows) hit zero weight columns -> padding is neutral.
    W1 = jnp.asarray(tp["W1"], jnp.float32)           # (30, 60)
    kp["w1s"] = z((H, H), jnp.float32).at[:H_RAW, :H_RAW].set(W1[:, :H_RAW] * INV_SQRT2)
    kp["w1c"] = z((H, H), jnp.float32).at[:H_RAW, :H_RAW].set(W1[:, H_RAW:] * INV_SQRT2)
    kp["b1"] = pad_col(tp["b1"], INV_SQRT2)

    for idx in (2, 3, 4):                             # also feed GELU -> fold 1/sqrt(2)
        W = jnp.asarray(tp[f"W{idx}"], jnp.float32)   # (30, 30)
        kp[f"w{idx}"] = z((H, H), jnp.float32).at[:H_RAW, :H_RAW].set(W * INV_SQRT2)
        kp[f"b{idx}"] = pad_col(tp[f"b{idx}"], INV_SQRT2)

    kp["w5"] = z((1, H), jnp.float32).at[0, :H_RAW].set(
        jnp.asarray(tp["W5"], jnp.float32)[0, :])     # (1, H) for MXU dot
    kp["b5"] = jnp.asarray(tp["b5"], jnp.float32).reshape(1, 1)
    return kp


# ---------------------------------------------------------------------------
# wrapper
# ---------------------------------------------------------------------------
def network_model_forward(y, kparams, block_n=None):
    """y: (N, 2) float32.  kparams: dict from prepare_params().  Returns (N, 1)."""
    N = y.shape[0]
    n_aligned = _round_up(max(N, 1), 256)

    if block_n is None:
        # v7x megacore: make the 1-D 'parallel' grid split (>=2 steps) whenever
        # the batch allows; cap at 4096 so v5e/v6e tiles stay big but grids
        # keep enough steps.  VMEM is not the constraint at these sizes.
        block_n = min(4096, _round_up(pl.cdiv(n_aligned, 2), 256))
    block_n = max(256, _round_up(block_n, 256))
    block_n = min(block_n, n_aligned)

    n_pad = _round_up(n_aligned, block_n)
    grid = (n_pad // block_n,)

    # batch on the lane axis, zero-padded up to the tile boundary
    y_t = jnp.zeros((2, n_pad), jnp.float32).at[:, :N].set(y.T)

    weights = (
        kparams["w0a"], kparams["w0b"], kparams["b0"],
        kparams["w1s"], kparams["w1c"], kparams["b1"],
        kparams["w2"], kparams["b2"],
        kparams["w3"], kparams["b3"],
        kparams["w4"], kparams["b4"],
        kparams["w5"], kparams["b5"],
    )

    def resident_spec(a):
        # full-array block, same (0, 0) index every grid step -> stays in VMEM
        return pl.BlockSpec(a.shape, lambda i: (0, 0))

    macs_per_col = 2 * H + 2 * H * H + 3 * H * H + H
    flops = 2 * macs_per_col * n_pad
    transcendentals = n_pad * (H + 4 * H)               # fused sincos + 4x erf
    weight_bytes = sum(int(a.size) * 4 for a in weights)
    bytes_accessed = 4 * (2 * n_pad + n_pad) + weight_bytes

    out = pl.pallas_call(
        _mlp_kernel,
        out_shape=jax.ShapeDtypeStruct((1, n_pad), jnp.float32),
        grid=grid,
        in_specs=[pl.BlockSpec((2, block_n), lambda i: (0, i))]
                 + [resident_spec(a) for a in weights],
        out_specs=pl.BlockSpec((1, block_n), lambda i: (0, i)),
        compiler_params=pltpu.CompilerParams(
            dimension_semantics=("parallel",)),
        cost_estimate=pl.CostEstimate(
            flops=flops,
            transcendentals=transcendentals,
            bytes_accessed=bytes_accessed),
    )(y_t, *weights)

    return out[:, :N].T                                  # back to (N, 1)


# ---------------------------------------------------------------------------
# init + pure-JAX reference (PyTorch semantics) + self-test
# ---------------------------------------------------------------------------
def init_params(key):
    """PyTorch-Linear-style init (uniform +/- 1/sqrt(fan_in)), (out, in) layout."""
    dims = [(30, 2), (30, 60), (30, 30), (30, 30), (30, 30), (1, 30)]
    keys = jax.random.split(key, 2 * len(dims))
    tp = {}
    for i, (fan_out, fan_in) in enumerate(dims):
        bound = 1.0 / math.sqrt(fan_in)
        tp[f"W{i}"] = jax.random.uniform(keys[2 * i], (fan_out, fan_in),
                                         minval=-bound, maxval=bound,
                                         dtype=jnp.float32)
        tp[f"b{i}"] = jax.random.uniform(keys[2 * i + 1], (fan_out,),
                                         minval=-bound, maxval=bound,
                                         dtype=jnp.float32)
    return tp


def reference_forward(y, tp):
    h = y @ tp["W0"].T + tp["b0"]
    x = jnp.concatenate([jnp.sin(h), jnp.cos(h)], axis=1)
    x = jax.nn.gelu(x @ tp["W1"].T + tp["b1"], approximate=False)
    x = jax.nn.gelu(x @ tp["W2"].T + tp["b2"], approximate=False)
    x = jax.nn.gelu(x @ tp["W3"].T + tp["b3"], approximate=False)
    x = jax.nn.gelu(x @ tp["W4"].T + tp["b4"], approximate=False)
    return x @ tp["W5"].T + tp["b5"]


if __name__ == "__main__":
    key = jax.random.PRNGKey(0)
    pkey, xkey = jax.random.split(key)

    tparams = init_params(pkey)
    kparams = prepare_params(tparams)

    N = 512                                              # small batch, 2-step grid
    y = jax.random.normal(xkey, (N, 2), dtype=jnp.float32)

    out = network_model_forward(y, kparams)
    out = jax.block_until_ready(out)

    ref = reference_forward(y, tparams)
    assert out.shape == (N, 1)
    assert jnp.allclose(out, ref, atol=1e-4, rtol=1e-4)

    print("KERNEL_OK")
</pallas_src>

<mosaic_0001>
module attributes {stable_mosaic.version = 11 : i64} {
  func.func @_mlp_kernel(%arg0: i32, %arg1: memref<2x256xf32, #tpu.memory_space<vmem>>, %arg2: memref<32x1xf32, #tpu.memory_space<vmem>>, %arg3: memref<32x1xf32, #tpu.memory_space<vmem>>, %arg4: memref<32x1xf32, #tpu.memory_space<vmem>>, %arg5: memref<32x32xf32, #tpu.memory_space<vmem>>, %arg6: memref<32x32xf32, #tpu.memory_space<vmem>>, %arg7: memref<32x1xf32, #tpu.memory_space<vmem>>, %arg8: memref<32x32xf32, #tpu.memory_space<vmem>>, %arg9: memref<32x1xf32, #tpu.memory_space<vmem>>, %arg10: memref<32x32xf32, #tpu.memory_space<vmem>>, %arg11: memref<32x1xf32, #tpu.memory_space<vmem>>, %arg12: memref<32x32xf32, #tpu.memory_space<vmem>>, %arg13: memref<32x1xf32, #tpu.memory_space<vmem>>, %arg14: memref<1x32xf32, #tpu.memory_space<vmem>>, %arg15: memref<1x1xf32, #tpu.memory_space<vmem>>, %arg16: memref<1x256xf32, #tpu.memory_space<vmem>>) attributes {dimension_semantics = [#tpu.dimension_semantics<parallel>], iteration_bounds = array<i64: 2>, scalar_prefetch = 0 : i64, scratch_operands = 0 : i64, tpu.core_type = #tpu.core_type<tc>, window_params = [{transform_indices = @transform_0, window_bounds = array<i64: 2, 256>}, {pipeline_mode = #tpu.pipeline_mode<synchronous>, transform_indices = @transform_1, window_bounds = array<i64: 32, 1>}, {pipeline_mode = #tpu.pipeline_mode<synchronous>, transform_indices = @transform_2, window_bounds = array<i64: 32, 1>}, {pipeline_mode = #tpu.pipeline_mode<synchronous>, transform_indices = @transform_3, window_bounds = array<i64: 32, 1>}, {pipeline_mode = #tpu.pipeline_mode<synchronous>, transform_indices = @transform_4, window_bounds = array<i64: 32, 32>}, {pipeline_mode = #tpu.pipeline_mode<synchronous>, transform_indices = @transform_5, window_bounds = array<i64: 32, 32>}, {pipeline_mode = #tpu.pipeline_mode<synchronous>, transform_indices = @transform_6, window_bounds = array<i64: 32, 1>}, {pipeline_mode = #tpu.pipeline_mode<synchronous>, transform_indices = @transform_7, window_bounds = array<i64: 32, 32>}, {pipeline_mode = #tpu.pipeline_mode<synchronous>, transform_indices = @transform_8, window_bounds = array<i64: 32, 1>}, {pipeline_mode = #tpu.pipeline_mode<synchronous>, transform_indices = @transform_9, window_bounds = array<i64: 32, 32>}, {pipeline_mode = #tpu.pipeline_mode<synchronous>, transform_indices = @transform_10, window_bounds = array<i64: 32, 1>}, {pipeline_mode = #tpu.pipeline_mode<synchronous>, transform_indices = @transform_11, window_bounds = array<i64: 32, 32>}, {pipeline_mode = #tpu.pipeline_mode<synchronous>, transform_indices = @transform_12, window_bounds = array<i64: 32, 1>}, {pipeline_mode = #tpu.pipeline_mode<synchronous>, transform_indices = @transform_13, window_bounds = array<i64: 1, 32>}, {pipeline_mode = #tpu.pipeline_mode<synchronous>, transform_indices = @transform_14, window_bounds = array<i64: 1, 1>}, {transform_indices = @transform_15, window_bounds = array<i64: 1, 256>}]} {
    %c0 = arith.constant 0 : index
    %c0_0 = arith.constant 0 : index
    %0 = vector.load %arg1[%c0, %c0_0] : memref<2x256xf32, #tpu.memory_space<vmem>>, vector<1x256xf32>
    %c1 = arith.constant 1 : index
    %c0_1 = arith.constant 0 : index
    %1 = vector.load %arg1[%c1, %c0_1] : memref<2x256xf32, #tpu.memory_space<vmem>>, vector<1x256xf32>
    %c0_2 = arith.constant 0 : index
    %c0_3 = arith.constant 0 : index
    %2 = vector.load %arg2[%c0_2, %c0_3] : memref<32x1xf32, #tpu.memory_space<vmem>>, vector<32x1xf32>
    %3 = vector.broadcast %2 : vector<32x1xf32> to vector<32x256xf32>
    %4 = vector.broadcast %0 : vector<1x256xf32> to vector<32x256xf32>
    %5 = arith.mulf %3, %4 : vector<32x256xf32>
    %c0_4 = arith.constant 0 : index
    %c0_5 = arith.constant 0 : index
    %6 = vector.load %arg3[%c0_4, %c0_5] : memref<32x1xf32, #tpu.memory_space<vmem>>, vector<32x1xf32>
    %7 = vector.broadcast %6 : vector<32x1xf32> to vector<32x256xf32>
    %8 = vector.broadcast %1 : vector<1x256xf32> to vector<32x256xf32>
    %9 = arith.mulf %7, %8 : vector<32x256xf32>
    %10 = arith.addf %5, %9 : vector<32x256xf32>
    %c0_6 = arith.constant 0 : index
    %c0_7 = arith.constant 0 : index
    %11 = vector.load %arg4[%c0_6, %c0_7] : memref<32x1xf32, #tpu.memory_space<vmem>>, vector<32x1xf32>
    %12 = vector.broadcast %11 : vector<32x1xf32> to vector<32x256xf32>
    %13 = arith.addf %10, %12 : vector<32x256xf32>
    %cst = arith.constant 0.636619746 : f32
    %14 = vector.broadcast %cst : f32 to vector<32x256xf32>
    %15 = arith.mulf %13, %14 : vector<32x256xf32>
    %16 = math.roundeven %15 : vector<32x256xf32>
    %cst_8 = arith.constant 1.5703125 : f32
    %17 = vector.broadcast %cst_8 : f32 to vector<32x256xf32>
    %18 = arith.mulf %16, %17 : vector<32x256xf32>
    %19 = arith.subf %13, %18 : vector<32x256xf32>
    %cst_9 = arith.constant 4.83751297E-4 : f32
    %20 = vector.broadcast %cst_9 : f32 to vector<32x256xf32>
    %21 = arith.mulf %16, %20 : vector<32x256xf32>
    %22 = arith.subf %19, %21 : vector<32x256xf32>
    %cst_10 = arith.constant 7.549790e-08 : f32
    %23 = vector.broadcast %cst_10 : f32 to vector<32x256xf32>
    %24 = arith.mulf %16, %23 : vector<32x256xf32>
    %25 = arith.subf %22, %24 : vector<32x256xf32>
    %26 = arith.mulf %25, %25 : vector<32x256xf32>
    %cst_11 = arith.constant -1.95152956E-4 : f32
    %27 = vector.broadcast %cst_11 : f32 to vector<32x256xf32>
    %28 = arith.mulf %27, %26 : vector<32x256xf32>
    %cst_12 = arith.constant 0.00833216123 : f32
    %29 = vector.broadcast %cst_12 : f32 to vector<32x256xf32>
    %30 = arith.addf %28, %29 : vector<32x256xf32>
    %31 = arith.mulf %30, %26 : vector<32x256xf32>
    %cst_13 = arith.constant 0.166666552 : f32
    %32 = vector.broadcast %cst_13 : f32 to vector<32x256xf32>
    %33 = arith.subf %31, %32 : vector<32x256xf32>
    %34 = arith.mulf %33, %26 : vector<32x256xf32>
    %35 = arith.mulf %34, %25 : vector<32x256xf32>
    %36 = arith.addf %35, %25 : vector<32x256xf32>
    %cst_14 = arith.constant 2.44331568E-5 : f32
    %37 = vector.broadcast %cst_14 : f32 to vector<32x256xf32>
    %38 = arith.mulf %37, %26 : vector<32x256xf32>
    %cst_15 = arith.constant 0.00138873165 : f32
    %39 = vector.broadcast %cst_15 : f32 to vector<32x256xf32>
    %40 = arith.subf %38, %39 : vector<32x256xf32>
    %41 = arith.mulf %40, %26 : vector<32x256xf32>
    %cst_16 = arith.constant 0.0416666456 : f32
    %42 = vector.broadcast %cst_16 : f32 to vector<32x256xf32>
    %43 = arith.addf %41, %42 : vector<32x256xf32>
    %44 = arith.mulf %26, %26 : vector<32x256xf32>
    %45 = arith.mulf %43, %44 : vector<32x256xf32>
    %cst_17 = arith.constant 5.000000e-01 : f32
    %46 = vector.broadcast %cst_17 : f32 to vector<32x256xf32>
    %47 = arith.mulf %46, %26 : vector<32x256xf32>
    %48 = arith.subf %45, %47 : vector<32x256xf32>
    %cst_18 = arith.constant 1.000000e+00 : f32
    %49 = vector.broadcast %cst_18 : f32 to vector<32x256xf32>
    %50 = arith.addf %48, %49 : vector<32x256xf32>
    %51 = arith.fptosi %16 : vector<32x256xf32> to vector<32x256xi32>
    %c1_i32 = arith.constant 1 : i32
    %52 = vector.broadcast %c1_i32 : i32 to vector<32x256xi32>
    %53 = arith.andi %51, %52 : vector<32x256xi32>
    %c1_i32_19 = arith.constant 1 : i32
    %54 = vector.broadcast %c1_i32_19 : i32 to vector<32x256xi32>
    %55 = arith.cmpi eq, %53, %54 : vector<32x256xi32>
    %56 = arith.select %55, %50, %36 : vector<32x256xi1>, vector<32x256xf32>
    %57 = arith.select %55, %36, %50 : vector<32x256xi1>, vector<32x256xf32>
    %c2_i32 = arith.constant 2 : i32
    %58 = vector.broadcast %c2_i32 : i32 to vector<32x256xi32>
    %59 = arith.andi %51, %58 : vector<32x256xi32>
    %c0_i32 = arith.constant 0 : i32
    %60 = vector.broadcast %c0_i32 : i32 to vector<32x256xi32>
    %61 = arith.cmpi ne, %59, %60 : vector<32x256xi32>
    %cst_20 = arith.constant 0.000000e+00 : f32
    %62 = vector.broadcast %cst_20 : f32 to vector<32x256xf32>
    %63 = arith.subf %62, %56 : vector<32x256xf32>
    %64 = arith.select %61, %63, %56 : vector<32x256xi1>, vector<32x256xf32>
    %c1_i32_21 = arith.constant 1 : i32
    %65 = vector.broadcast %c1_i32_21 : i32 to vector<32x256xi32>
    %66 = arith.addi %51, %65 : vector<32x256xi32>
    %c2_i32_22 = arith.constant 2 : i32
    %67 = vector.broadcast %c2_i32_22 : i32 to vector<32x256xi32>
    %68 = arith.andi %66, %67 : vector<32x256xi32>
    %c0_i32_23 = arith.constant 0 : i32
    %69 = vector.broadcast %c0_i32_23 : i32 to vector<32x256xi32>
    %70 = arith.cmpi ne, %68, %69 : vector<32x256xi32>
    %cst_24 = arith.constant 0.000000e+00 : f32
    %71 = vector.broadcast %cst_24 : f32 to vector<32x256xf32>
    %72 = arith.subf %71, %57 : vector<32x256xf32>
    %73 = arith.select %70, %72, %57 : vector<32x256xi1>, vector<32x256xf32>
    %c0_25 = arith.constant 0 : index
    %c0_26 = arith.constant 0 : index
    %74 = vector.load %arg5[%c0_25, %c0_26] : memref<32x32xf32, #tpu.memory_space<vmem>>, vector<32x32xf32>
    %cst_27 = arith.constant dense<0.000000e+00> : vector<32x256xf32>
    %75 = tpu.matmul %74, %64, %cst_27 {dimension_numbers = #tpu.dot_dimension_numbers<[1], [0], [0], [1], [0, 0, 1, 1], [], []>} : vector<32x32xf32>, vector<32x256xf32>, vector<32x256xf32> -> vector<32x256xf32>
    %c0_28 = arith.constant 0 : index
    %c0_29 = arith.constant 0 : index
    %76 = vector.load %arg6[%c0_28, %c0_29] : memref<32x32xf32, #tpu.memory_space<vmem>>, vector<32x32xf32>
    %cst_30 = arith.constant dense<0.000000e+00> : vector<32x256xf32>
    %77 = tpu.matmul %76, %73, %cst_30 {dimension_numbers = #tpu.dot_dimension_numbers<[1], [0], [0], [1], [0, 0, 1, 1], [], []>} : vector<32x32xf32>, vector<32x256xf32>, vector<32x256xf32> -> vector<32x256xf32>
    %78 = arith.addf %75, %77 : vector<32x256xf32>
    %c0_31 = arith.constant 0 : index
    %c0_32 = arith.constant 0 : index
    %79 = vector.load %arg7[%c0_31, %c0_32] : memref<32x1xf32, #tpu.memory_space<vmem>>, vector<32x1xf32>
    %80 = vector.broadcast %79 : vector<32x1xf32> to vector<32x256xf32>
    %81 = arith.addf %78, %80 : vector<32x256xf32>
    %cst_33 = arith.constant 0.707106769 : f32
    %82 = vector.broadcast %cst_33 : f32 to vector<32x256xf32>
    %83 = arith.mulf %82, %81 : vector<32x256xf32>
    %84 = math.erf %81 : vector<32x256xf32>
    %cst_34 = arith.constant 1.000000e+00 : f32
    %85 = vector.broadcast %cst_34 : f32 to vector<32x256xf32>
    %86 = arith.addf %85, %84 : vector<32x256xf32>
    %87 = arith.mulf %83, %86 : vector<32x256xf32>
    %c0_35 = arith.constant 0 : index
    %c0_36 = arith.constant 0 : index
    %88 = vector.load %arg8[%c0_35, %c0_36] : memref<32x32xf32, #tpu.memory_space<vmem>>, vector<32x32xf32>
    %cst_37 = arith.constant dense<0.000000e+00> : vector<32x256xf32>
    %89 = tpu.matmul %88, %87, %cst_37 {dimension_numbers = #tpu.dot_dimension_numbers<[1], [0], [0], [1], [0, 0, 1, 1], [], []>} : vector<32x32xf32>, vector<32x256xf32>, vector<32x256xf32> -> vector<32x256xf32>
    %c0_38 = arith.constant 0 : index
    %c0_39 = arith.constant 0 : index
    %90 = vector.load %arg9[%c0_38, %c0_39] : memref<32x1xf32, #tpu.memory_space<vmem>>, vector<32x1xf32>
    %91 = vector.broadcast %90 : vector<32x1xf32> to vector<32x256xf32>
    %92 = arith.addf %89, %91 : vector<32x256xf32>
    %cst_40 = arith.constant 0.707106769 : f32
    %93 = vector.broadcast %cst_40 : f32 to vector<32x256xf32>
    %94 = arith.mulf %93, %92 : vector<32x256xf32>
    %95 = math.erf %92 : vector<32x256xf32>
    %cst_41 = arith.constant 1.000000e+00 : f32
    %96 = vector.broadcast %cst_41 : f32 to vector<32x256xf32>
    %97 = arith.addf %96, %95 : vector<32x256xf32>
    %98 = arith.mulf %94, %97 : vector<32x256xf32>
    %c0_42 = arith.constant 0 : index
    %c0_43 = arith.constant 0 : index
    %99 = vector.load %arg10[%c0_42, %c0_43] : memref<32x32xf32, #tpu.memory_space<vmem>>, vector<32x32xf32>
    %cst_44 = arith.constant dense<0.000000e+00> : vector<32x256xf32>
    %100 = tpu.matmul %99, %98, %cst_44 {dimension_numbers = #tpu.dot_dimension_numbers<[1], [0], [0], [1], [0, 0, 1, 1], [], []>} : vector<32x32xf32>, vector<32x256xf32>, vector<32x256xf32> -> vector<32x256xf32>
    %c0_45 = arith.constant 0 : index
    %c0_46 = arith.constant 0 : index
    %101 = vector.load %arg11[%c0_45, %c0_46] : memref<32x1xf32, #tpu.memory_space<vmem>>, vector<32x1xf32>
    %102 = vector.broadcast %101 : vector<32x1xf32> to vector<32x256xf32>
    %103 = arith.addf %100, %102 : vector<32x256xf32>
    %cst_47 = arith.constant 0.707106769 : f32
    %104 = vector.broadcast %cst_47 : f32 to vector<32x256xf32>
    %105 = arith.mulf %104, %103 : vector<32x256xf32>
    %106 = math.erf %103 : vector<32x256xf32>
    %cst_48 = arith.constant 1.000000e+00 : f32
    %107 = vector.broadcast %cst_48 : f32 to vector<32x256xf32>
    %108 = arith.addf %107, %106 : vector<32x256xf32>
    %109 = arith.mulf %105, %108 : vector<32x256xf32>
    %c0_49 = arith.constant 0 : index
    %c0_50 = arith.constant 0 : index
    %110 = vector.load %arg12[%c0_49, %c0_50] : memref<32x32xf32, #tpu.memory_space<vmem>>, vector<32x32xf32>
    %cst_51 = arith.constant dense<0.000000e+00> : vector<32x256xf32>
    %111 = tpu.matmul %110, %109, %cst_51 {dimension_numbers = #tpu.dot_dimension_numbers<[1], [0], [0], [1], [0, 0, 1, 1], [], []>} : vector<32x32xf32>, vector<32x256xf32>, vector<32x256xf32> -> vector<32x256xf32>
    %c0_52 = arith.constant 0 : index
    %c0_53 = arith.constant 0 : index
    %112 = vector.load %arg13[%c0_52, %c0_53] : memref<32x1xf32, #tpu.memory_space<vmem>>, vector<32x1xf32>
    %113 = vector.broadcast %112 : vector<32x1xf32> to vector<32x256xf32>
    %114 = arith.addf %111, %113 : vector<32x256xf32>
    %cst_54 = arith.constant 0.707106769 : f32
    %115 = vector.broadcast %cst_54 : f32 to vector<32x256xf32>
    %116 = arith.mulf %115, %114 : vector<32x256xf32>
    %117 = math.erf %114 : vector<32x256xf32>
    %cst_55 = arith.constant 1.000000e+00 : f32
    %118 = vector.broadcast %cst_55 : f32 to vector<32x256xf32>
    %119 = arith.addf %118, %117 : vector<32x256xf32>
    %120 = arith.mulf %116, %119 : vector<32x256xf32>
    %c0_56 = arith.constant 0 : index
    %c0_57 = arith.constant 0 : index
    %121 = vector.load %arg14[%c0_56, %c0_57] : memref<1x32xf32, #tpu.memory_space<vmem>>, vector<1x32xf32>
    %cst_58 = arith.constant dense<0.000000e+00> : vector<1x256xf32>
    %122 = tpu.matmul %121, %120, %cst_58 {dimension_numbers = #tpu.dot_dimension_numbers<[1], [0], [0], [1], [0, 0, 1, 1], [], []>} : vector<1x32xf32>, vector<32x256xf32>, vector<1x256xf32> -> vector<1x256xf32>
    %c0_59 = arith.constant 0 : index
    %c0_60 = arith.constant 0 : index
    %123 = vector.load %arg15[%c0_59, %c0_60] : memref<1x1xf32, #tpu.memory_space<vmem>>, vector<1x1xf32>
    %124 = vector.broadcast %123 : vector<1x1xf32> to vector<1x256xf32>
    %125 = arith.addf %122, %124 : vector<1x256xf32>
    %c0_61 = arith.constant 0 : index
    %c0_62 = arith.constant 0 : index
    %126 = vector.load %arg16[%c0_61, %c0_62] : memref<1x256xf32, #tpu.memory_space<vmem>>, vector<1x256xf32>
    tpu.vector_store %arg16[%c0_61, %c0_62], %125 {strides = array<i32>} : memref<1x256xf32, #tpu.memory_space<vmem>>, vector<1x256xf32>,
    return
  }
  func.func @transform_0(%arg0: i32) -> (i32, i32) {
    %c0_i32 = arith.constant 0 : i32
    %c0_i32_0 = arith.constant 0 : i32
    return %c0_i32, %arg0 : i32, i32
  }
  func.func @transform_1(%arg0: i32) -> (i32, i32) {
    %c0_i32 = arith.constant 0 : i32
    %c0_i32_0 = arith.constant 0 : i32
    %c0_i32_1 = arith.constant 0 : i32
    return %c0_i32, %c0_i32_0 : i32, i32
  }
  func.func @transform_2(%arg0: i32) -> (i32, i32) {
    %c0_i32 = arith.constant 0 : i32
    %c0_i32_0 = arith.constant 0 : i32
    %c0_i32_1 = arith.constant 0 : i32
    return %c0_i32, %c0_i32_0 : i32, i32
  }
  func.func @transform_3(%arg0: i32) -> (i32, i32) {
    %c0_i32 = arith.constant 0 : i32
    %c0_i32_0 = arith.constant 0 : i32
    %c0_i32_1 = arith.constant 0 : i32
    return %c0_i32, %c0_i32_0 : i32, i32
  }
  func.func @transform_4(%arg0: i32) -> (i32, i32) {
    %c0_i32 = arith.constant 0 : i32
    %c0_i32_0 = arith.constant 0 : i32
    %c0_i32_1 = arith.constant 0 : i32
    return %c0_i32, %c0_i32_0 : i32, i32
  }
  func.func @transform_5(%arg0: i32) -> (i32, i32) {
    %c0_i32 = arith.constant 0 : i32
    %c0_i32_0 = arith.constant 0 : i32
    %c0_i32_1 = arith.constant 0 : i32
    return %c0_i32, %c0_i32_0 : i32, i32
  }
  func.func @transform_6(%arg0: i32) -> (i32, i32) {
    %c0_i32 = arith.constant 0 : i32
    %c0_i32_0 = arith.constant 0 : i32
    %c0_i32_1 = arith.constant 0 : i32
    return %c0_i32, %c0_i32_0 : i32, i32
  }
  func.func @transform_7(%arg0: i32) -> (i32, i32) {
    %c0_i32 = arith.constant 0 : i32
    %c0_i32_0 = arith.constant 0 : i32
    %c0_i32_1 = arith.constant 0 : i32
    return %c0_i32, %c0_i32_0 : i32, i32
  }
  func.func @transform_8(%arg0: i32) -> (i32, i32) {
    %c0_i32 = arith.constant 0 : i32
    %c0_i32_0 = arith.constant 0 : i32
    %c0_i32_1 = arith.constant 0 : i32
    return %c0_i32, %c0_i32_0 : i32, i32
  }
  func.func @transform_9(%arg0: i32) -> (i32, i32) {
    %c0_i32 = arith.constant 0 : i32
    %c0_i32_0 = arith.constant 0 : i32
    %c0_i32_1 = arith.constant 0 : i32
    return %c0_i32, %c0_i32_0 : i32, i32
  }
  func.func @transform_10(%arg0: i32) -> (i32, i32) {
    %c0_i32 = arith.constant 0 : i32
    %c0_i32_0 = arith.constant 0 : i32
    %c0_i32_1 = arith.constant 0 : i32
    return %c0_i32, %c0_i32_0 : i32, i32
  }
  func.func @transform_11(%arg0: i32) -> (i32, i32) {
    %c0_i32 = arith.constant 0 : i32
    %c0_i32_0 = arith.constant 0 : i32
    %c0_i32_1 = arith.constant 0 : i32
    return %c0_i32, %c0_i32_0 : i32, i32
  }
  func.func @transform_12(%arg0: i32) -> (i32, i32) {
    %c0_i32 = arith.constant 0 : i32
    %c0_i32_0 = arith.constant 0 : i32
    %c0_i32_1 = arith.constant 0 : i32
    return %c0_i32, %c0_i32_0 : i32, i32
  }
  func.func @transform_13(%arg0: i32) -> (i32, i32) {
    %c0_i32 = arith.constant 0 : i32
    %c0_i32_0 = arith.constant 0 : i32
    %c0_i32_1 = arith.constant 0 : i32
    return %c0_i32, %c0_i32_0 : i32, i32
  }
  func.func @transform_14(%arg0: i32) -> (i32, i32) {
    %c0_i32 = arith.constant 0 : i32
    %c0_i32_0 = arith.constant 0 : i32
    %c0_i32_1 = arith.constant 0 : i32
    return %c0_i32, %c0_i32_0 : i32, i32
  }
  func.func @transform_15(%arg0: i32) -> (i32, i32) {
    %c0_i32 = arith.constant 0 : i32
    %c0_i32_0 = arith.constant 0 : i32
    return %c0_i32, %arg0 : i32, i32
  }
}

</mosaic_0001>

<llo_original>
// kernel: tpu_custom_call.1
$region0: #{tpu_custom_call.1}
  #allocation0 [shape = 'u32[]', space=smem, size = 0x4, offset = 0x4, fixed_abs, tag = 'smem constant byte address 0x4 - core index']
  #allocation1 [shape = 'u32[72,128]{1,0:T(1,128)}', space=vmem, size = 0x9000, scoped, tag = 'internal scratch']
  #allocation2 [shape = 'f32[1,1]{1,0:T(1,128)S(1)}', space=vmem, size = 0x200, scoped, tag = 'scoped memory for tpu_custom_call.1']
  %s0 = inlined_call_operand.vmem [shape: f32[2,512], index: 0, kind: input, shape index: {}]
  %s1 = inlined_call_operand.vmem [shape: f32[32,1], index: 1, kind: input, shape index: {}]
  %s2 = inlined_call_operand.vmem [shape: f32[32,1], index: 2, kind: input, shape index: {}]
  %s3 = inlined_call_operand.vmem [shape: f32[32,1], index: 3, kind: input, shape index: {}]
  %s4 = inlined_call_operand.vmem [shape: f32[32,32], index: 4, kind: input, shape index: {}]
  %s5 = inlined_call_operand.vmem [shape: f32[32,32], index: 5, kind: input, shape index: {}]
  %s6 = inlined_call_operand.vmem [shape: f32[32,1], index: 6, kind: input, shape index: {}]
  %s7 = inlined_call_operand.vmem [shape: f32[32,32], index: 7, kind: input, shape index: {}]
  %s8 = inlined_call_operand.vmem [shape: f32[32,1], index: 8, kind: input, shape index: {}]
  %s9 = inlined_call_operand.vmem [shape: f32[32,32], index: 9, kind: input, shape index: {}]
  %s10 = inlined_call_operand.vmem [shape: f32[32,1], index: 10, kind: input, shape index: {}]
  %s11 = inlined_call_operand.vmem [shape: f32[32,32], index: 11, kind: input, shape index: {}]
  %s12 = inlined_call_operand.vmem [shape: f32[32,1], index: 12, kind: input, shape index: {}]
  %s13 = inlined_call_operand.vmem [shape: f32[1,32], index: 13, kind: input, shape index: {}]
  %s14 = inlined_call_operand.<no memory space> [shape: f32[1,1], index: 14, kind: input, shape index: {}]
  %s15 = inlined_call_operand.hbm [shape: f32[1,512], index: 15, kind: output, shape index: {}]
  %s16 = sld [smem:[#allocation0]]
  $region93: #{tpu_custom_call.1} parent=0
    _
  %s18 = ssub.s32 1, %s16
  %s19 = scalar_select 0, %s18, %s16
  %v20 = vstv %s14
  %21 = vst [vmem:[#allocation2] sm:$0x1] %v20
  $region1: #{tpu_custom_call.1} parent=0
    #allocation3 [shape = 'u8[2048]{0}', space=vmem, size = 0x800, scoped, tag = 'output window, operand 0']
    #allocation4 [shape = 's32[2]{0}', space=sflag, size = 0x8, scoped, tag = 'scoped memory for tpu_custom_call.1']
    %22 = vsyncpa [#allocation4], 0
    %s23 = scalar_lea.sflag [#allocation4], 1
    %24 = vsyncpa %s23, 0
    loop: start=0, step=1, limit=4
    $region2: #{tpu_custom_call.1} parent=1 // loop_pre_header
      _
    $region3: #{tpu_custom_call.1} parent=1 // loop_header
      %s26 = sphi 0, %s30
      %p27 = scmp.ge.s32.totalorder %s26, 4
      %s36 = sphi 0, %s38
      %s39 = sphi 0, %s36
      %s40 = sphi 0, %s39
      %s56 = sphi 0, %s40
      %s60 = sphi 0, %s60
      %s62 = sphi 0, %s60
      %s63 = sphi 0, %s62
      %s77 = sphi 0, %s63
      %s81 = sphi 0, %s81
      %s83 = sphi 0, %s81
      %s84 = sphi 0, %s83
      %s98 = sphi 0, %s84
      %s102 = sphi 0, %s102
      %s104 = sphi 0, %s102
      %s105 = sphi 0, %s104
      %s119 = sphi 0, %s105
      %s123 = sphi 0, %s123
      %s125 = sphi 0, %s123
      %s126 = sphi 0, %s125
      %s140 = sphi 0, %s126
      %s144 = sphi 0, %s144
      %s146 = sphi 0, %s144
      %s147 = sphi 0, %s146
      %s161 = sphi 0, %s147
      %s165 = sphi 0, %s165
      %s167 = sphi 0, %s165
      %s168 = sphi 0, %s167
      %s182 = sphi 0, %s168
      %s186 = sphi 0, %s186
      %s188 = sphi 0, %s186
      %s189 = sphi 0, %s188
      %s203 = sphi 0, %s189
      %s207 = sphi 0, %s207
      %s209 = sphi 0, %s207
      %s210 = sphi 0, %s209
      %s224 = sphi 0, %s210
      %s228 = sphi 0, %s228
      %s230 = sphi 0, %s228
      %s231 = sphi 0, %s230
      %s245 = sphi 0, %s231
      %s249 = sphi 0, %s249
      %s251 = sphi 0, %s249
      %s252 = sphi 0, %s251
      %s266 = sphi 0, %s252
      %s270 = sphi 0, %s270
      %s272 = sphi 0, %s270
      %s273 = sphi 0, %s272
      %s287 = sphi 0, %s273
      %s291 = sphi 0, %s291
      %s293 = sphi 0, %s291
      %s294 = sphi 0, %s293
      %s308 = sphi 0, %s294
      %s312 = sphi 0, %s312
      %s314 = sphi 0, %s312
      %s315 = sphi 0, %s314
      %s329 = sphi 0, %s315
      %s333 = sphi 0, %s333
      %s335 = sphi 0, %s333
      %s336 = sphi 0, %s335
      %s350 = sphi 0, %s336
      %s356 = sphi 0, %s358
      %s359 = sphi 0, %s356
      %s360 = sphi 0, %s359
      %s376 = sphi 0, %s360
    $region4: #{tpu_custom_call.1} parent=1 // loop_header_branch
      %29 = sbr.rel (%p27) target = $region8
    $region5: #{tpu_custom_call.1} parent=1 // loop_body
      %s31 = ssub.s32 %s26, 1
      %s32 = ssub.s32 %s26, 2
      %s33 = sadd.s32 %s26, 1
      %s34 = ssub.s32 %s26, %s33
      %p35 = scmp.eq.s32.totalorder %s34, 0
      %s37 = sadd.s32 %s36, 1
      %s38 = scalar_select %p35, %s36, %s37
      %p41 = pneg %p35
      %p42 = scmp.eq.s32.totalorder %s26, 1
      %p43 = por %p41, %p42
      %p44 = scmp.ne.s32.totalorder %s36, %s39
      %p45 = scmp.eq.s32.totalorder %s26, 0
      %p46 = por %p44, %p45
      %p47 = scmp.ne.s32.totalorder %s36, %s39
      %p48 = scmp.eq.s32.totalorder %s31, 1
      %p49 = por %p47, %p48
      %p50 = scmp.ne.s32.totalorder %s39, %s40
      %p51 = scmp.eq.s32.totalorder %s31, 0
      %p52 = por %p50, %p51
      %p53 = scmp.ne.s32.totalorder %s39, %s40
      %p54 = scmp.eq.s32.totalorder %s32, 1
      %p55 = por %p53, %p54
      %p57 = scmp.ne.s32.totalorder %s40, %s56
      %p58 = scmp.eq.s32.totalorder %s32, 0
      %p59 = por %p57, %p58
      %s61 = sadd.s32 %s60, 1
      %p64 = scmp.eq.s32.totalorder %s26, 1
      %p65 = scmp.ne.s32.totalorder %s60, %s62
      %p66 = scmp.eq.s32.totalorder %s26, 0
      %p67 = por %p65, %p66
      %p68 = scmp.ne.s32.totalorder %s60, %s62
      %p69 = scmp.eq.s32.totalorder %s31, 1
      %p70 = por %p68, %p69
      %p71 = scmp.ne.s32.totalorder %s62, %s63
      %p72 = scmp.eq.s32.totalorder %s31, 0
      %p73 = por %p71, %p72
      %p74 = scmp.ne.s32.totalorder %s62, %s63
      %p75 = scmp.eq.s32.totalorder %s32, 1
      %p76 = por %p74, %p75
      %p78 = scmp.ne.s32.totalorder %s63, %s77
      %p79 = scmp.eq.s32.totalorder %s32, 0
      %p80 = por %p78, %p79
      %s82 = sadd.s32 %s81, 1
      %p85 = scmp.eq.s32.totalorder %s26, 1
      %p86 = scmp.ne.s32.totalorder %s81, %s83
      %p87 = scmp.eq.s32.totalorder %s26, 0
      %p88 = por %p86, %p87
      %p89 = scmp.ne.s32.totalorder %s81, %s83
      %p90 = scmp.eq.s32.totalorder %s31, 1
      %p91 = por %p89, %p90
      %p92 = scmp.ne.s32.totalorder %s83, %s84
      %p93 = scmp.eq.s32.totalorder %s31, 0
      %p94 = por %p92, %p93
      %p95 = scmp.ne.s32.totalorder %s83, %s84
      %p96 = scmp.eq.s32.totalorder %s32, 1
      %p97 = por %p95, %p96
      %p99 = scmp.ne.s32.totalorder %s84, %s98
      %p100 = scmp.eq.s32.totalorder %s32, 0
      %p101 = por %p99, %p100
      %s103 = sadd.s32 %s102, 1
      %p106 = scmp.eq.s32.totalorder %s26, 1
      %p107 = scmp.ne.s32.totalorder %s102, %s104
      %p108 = scmp.eq.s32.totalorder %s26, 0
      %p109 = por %p107, %p108
      %p110 = scmp.ne.s32.totalorder %s102, %s104
      %p111 = scmp.eq.s32.totalorder %s31, 1
      %p112 = por %p110, %p111
      %p113 = scmp.ne.s32.totalorder %s104, %s105
      %p114 = scmp.eq.s32.totalorder %s31, 0
      %p115 = por %p113, %p114
      %p116 = scmp.ne.s32.totalorder %s104, %s105
      %p117 = scmp.eq.s32.totalorder %s32, 1
      %p118 = por %p116, %p117
      %p120 = scmp.ne.s32.totalorder %s105, %s119
      %p121 = scmp.eq.s32.totalorder %s32, 0
      %p122 = por %p120, %p121
      %s124 = sadd.s32 %s123, 1
      %p127 = scmp.eq.s32.totalorder %s26, 1
      %p128 = scmp.ne.s32.totalorder %s123, %s125
      %p129 = scmp.eq.s32.totalorder %s26, 0
      %p130 = por %p128, %p129
      %p131 = scmp.ne.s32.totalorder %s123, %s125
      %p132 = scmp.eq.s32.totalorder %s31, 1
      %p133 = por %p131, %p132
      %p134 = scmp.ne.s32.totalorder %s125, %s126
      %p135 = scmp.eq.s32.totalorder %s31, 0
      %p136 = por %p134, %p135
      %p137 = scmp.ne.s32.totalorder %s125, %s126
      %p138 = scmp.eq.s32.totalorder %s32, 1
      %p139 = por %p137, %p138
      %p141 = scmp.ne.s32.totalorder %s126, %s140
      %p142 = scmp.eq.s32.totalorder %s32, 0
      %p143 = por %p141, %p142
      %s145 = sadd.s32 %s144, 1
      %p148 = scmp.eq.s32.totalorder %s26, 1
      %p149 = scmp.ne.s32.totalorder %s144, %s146
      %p150 = scmp.eq.s32.totalorder %s26, 0
      %p151 = por %p149, %p150
      %p152 = scmp.ne.s32.totalorder %s144, %s146
      %p153 = scmp.eq.s32.totalorder %s31, 1
      %p154 = por %p152, %p153
      %p155 = scmp.ne.s32.totalorder %s146, %s147
      %p156 = scmp.eq.s32.totalorder %s31, 0
      %p157 = por %p155, %p156
      %p158 = scmp.ne.s32.totalorder %s146, %s147
      %p159 = scmp.eq.s32.totalorder %s32, 1
      %p160 = por %p158, %p159
      %p162 = scmp.ne.s32.totalorder %s147, %s161
      %p163 = scmp.eq.s32.totalorder %s32, 0
      %p164 = por %p162, %p163
      %s166 = sadd.s32 %s165, 1
      %p169 = scmp.eq.s32.totalorder %s26, 1
      %p170 = scmp.ne.s32.totalorder %s165, %s167
      %p171 = scmp.eq.s32.totalorder %s26, 0
      %p172 = por %p170, %p171
      %p173 = scmp.ne.s32.totalorder %s165, %s167
      %p174 = scmp.eq.s32.totalorder %s31, 1
      %p175 = por %p173, %p174
      %p176 = scmp.ne.s32.totalorder %s167, %s168
      %p177 = scmp.eq.s32.totalorder %s31, 0
      %p178 = por %p176, %p177
      %p179 = scmp.ne.s32.totalorder %s167, %s168
      %p180 = scmp.eq.s32.totalorder %s32, 1
      %p181 = por %p179, %p180
      %p183 = scmp.ne.s32.totalorder %s168, %s182
      %p184 = scmp.eq.s32.totalorder %s32, 0
      %p185 = por %p183, %p184
      %s187 = sadd.s32 %s186, 1
      %p190 = scmp.eq.s32.totalorder %s26, 1
      %p191 = scmp.ne.s32.totalorder %s186, %s188
      %p192 = scmp.eq.s32.totalorder %s26, 0
      %p193 = por %p191, %p192
      %p194 = scmp.ne.s32.totalorder %s186, %s188
      %p195 = scmp.eq.s32.totalorder %s31, 1
      %p196 = por %p194, %p195
      %p197 = scmp.ne.s32.totalorder %s188, %s189
      %p198 = scmp.eq.s32.totalorder %s31, 0
      %p199 = por %p197, %p198
      %p200 = scmp.ne.s32.totalorder %s188, %s189
      %p201 = scmp.eq.s32.totalorder %s32, 1
      %p202 = por %p200, %p201
      %p204 = scmp.ne.s32.totalorder %s189, %s203
      %p205 = scmp.eq.s32.totalorder %s32, 0
      %p206 = por %p204, %p205
      %s208 = sadd.s32 %s207, 1
      %p211 = scmp.eq.s32.totalorder %s26, 1
      %p212 = scmp.ne.s32.totalorder %s207, %s209
      %p213 = scmp.eq.s32.totalorder %s26, 0
      %p214 = por %p212, %p213
      %p215 = scmp.ne.s32.totalorder %s207, %s209
      %p216 = scmp.eq.s32.totalorder %s31, 1
      %p217 = por %p215, %p216
      %p218 = scmp.ne.s32.totalorder %s209, %s210
      %p219 = scmp.eq.s32.totalorder %s31, 0
      %p220 = por %p218, %p219
      %p221 = scmp.ne.s32.totalorder %s209, %s210
      %p222 = scmp.eq.s32.totalorder %s32, 1
      %p223 = por %p221, %p222
      %p225 = scmp.ne.s32.totalorder %s210, %s224
      %p226 = scmp.eq.s32.totalorder %s32, 0
      %p227 = por %p225, %p226
      %s229 = sadd.s32 %s228, 1
      %p232 = scmp.eq.s32.totalorder %s26, 1
      %p233 = scmp.ne.s32.totalorder %s228, %s230
      %p234 = scmp.eq.s32.totalorder %s26, 0
      %p235 = por %p233, %p234
      %p236 = scmp.ne.s32.totalorder %s228, %s230
      %p237 = scmp.eq.s32.totalorder %s31, 1
      %p238 = por %p236, %p237
      %p239 = scmp.ne.s32.totalorder %s230, %s231
      %p240 = scmp.eq.s32.totalorder %s31, 0
      %p241 = por %p239, %p240
      %p242 = scmp.ne.s32.totalorder %s230, %s231
      %p243 = scmp.eq.s32.totalorder %s32, 1
      %p244 = por %p242, %p243
      %p246 = scmp.ne.s32.totalorder %s231, %s245
      %p247 = scmp.eq.s32.totalorder %s32, 0
      %p248 = por %p246, %p247
      %s250 = sadd.s32 %s249, 1
      %p253 = scmp.eq.s32.totalorder %s26, 1
      %p254 = scmp.ne.s32.totalorder %s249, %s251
      %p255 = scmp.eq.s32.totalorder %s26, 0
      %p256 = por %p254, %p255
      %p257 = scmp.ne.s32.totalorder %s249, %s251
      %p258 = scmp.eq.s32.totalorder %s31, 1
      %p259 = por %p257, %p258
      %p260 = scmp.ne.s32.totalorder %s251, %s252
      %p261 = scmp.eq.s32.totalorder %s31, 0
      %p262 = por %p260, %p261
      %p263 = scmp.ne.s32.totalorder %s251, %s252
      %p264 = scmp.eq.s32.totalorder %s32, 1
      %p265 = por %p263, %p264
      %p267 = scmp.ne.s32.totalorder %s252, %s266
      %p268 = scmp.eq.s32.totalorder %s32, 0
      %p269 = por %p267, %p268
      %s271 = sadd.s32 %s270, 1
      %p274 = scmp.eq.s32.totalorder %s26, 1
      %p275 = scmp.ne.s32.totalorder %s270, %s272
      %p276 = scmp.eq.s32.totalorder %s26, 0
      %p277 = por %p275, %p276
      %p278 = scmp.ne.s32.totalorder %s270, %s272
      %p279 = scmp.eq.s32.totalorder %s31, 1
      %p280 = por %p278, %p279
      %p281 = scmp.ne.s32.totalorder %s272, %s273
      %p282 = scmp.eq.s32.totalorder %s31, 0
      %p283 = por %p281, %p282
      %p284 = scmp.ne.s32.totalorder %s272, %s273
      %p285 = scmp.eq.s32.totalorder %s32, 1
      %p286 = por %p284, %p285
      %p288 = scmp.ne.s32.totalorder %s273, %s287
      %p289 = scmp.eq.s32.totalorder %s32, 0
      %p290 = por %p288, %p289
      %s292 = sadd.s32 %s291, 1
      %p295 = scmp.eq.s32.totalorder %s26, 1
      %p296 = scmp.ne.s32.totalorder %s291, %s293
      %p297 = scmp.eq.s32.totalorder %s26, 0
      %p298 = por %p296, %p297
      %p299 = scmp.ne.s32.totalorder %s291, %s293
      %p300 = scmp.eq.s32.totalorder %s31, 1
      %p301 = por %p299, %p300
      %p302 = scmp.ne.s32.totalorder %s293, %s294
      %p303 = scmp.eq.s32.totalorder %s31, 0
      %p304 = por %p302, %p303
      %p305 = scmp.ne.s32.totalorder %s293, %s294
      %p306 = scmp.eq.s32.totalorder %s32, 1
      %p307 = por %p305, %p306
      %p309 = scmp.ne.s32.totalorder %s294, %s308
      %p310 = scmp.eq.s32.totalorder %s32, 0
      %p311 = por %p309, %p310
      %s313 = sadd.s32 %s312, 1
      %p316 = scmp.eq.s32.totalorder %s26, 1
      %p317 = scmp.ne.s32.totalorder %s312, %s314
      %p318 = scmp.eq.s32.totalorder %s26, 0
      %p319 = por %p317, %p318
      %p320 = scmp.ne.s32.totalorder %s312, %s314
      %p321 = scmp.eq.s32.totalorder %s31, 1
      %p322 = por %p320, %p321
      %p323 = scmp.ne.s32.totalorder %s314, %s315
      %p324 = scmp.eq.s32.totalorder %s31, 0
      %p325 = por %p323, %p324
      %p326 = scmp.ne.s32.totalorder %s314, %s315
      %p327 = scmp.eq.s32.totalorder %s32, 1
      %p328 = por %p326, %p327
      %p330 = scmp.ne.s32.totalorder %s315, %s329
      %p331 = scmp.eq.s32.totalorder %s32, 0
      %p332 = por %p330, %p331
      %s334 = sadd.s32 %s333, 1
      %p337 = scmp.eq.s32.totalorder %s26, 1
      %p338 = scmp.ne.s32.totalorder %s333, %s335
      %p339 = scmp.eq.s32.totalorder %s26, 0
      %p340 = por %p338, %p339
      %p341 = scmp.ne.s32.totalorder %s333, %s335
      %p342 = scmp.eq.s32.totalorder %s31, 1
      %p343 = por %p341, %p342
      %p344 = scmp.ne.s32.totalorder %s335, %s336
      %p345 = scmp.eq.s32.totalorder %s31, 0
      %p346 = por %p344, %p345
      %p347 = scmp.ne.s32.totalorder %s335, %s336
      %p348 = scmp.eq.s32.totalorder %s32, 1
      %p349 = por %p347, %p348
      %p351 = scmp.ne.s32.totalorder %s336, %s350
      %p352 = scmp.eq.s32.totalorder %s32, 0
      %p353 = por %p351, %p352
      %s354 = ssub.s32 %s26, %s33
      %p355 = scmp.eq.s32.totalorder %s354, 0
      %s357 = sadd.s32 %s356, 1
      %s358 = scalar_select %p355, %s356, %s357
      %p361 = pneg %p355
      %p362 = scmp.eq.s32.totalorder %s26, 1
      %p363 = por %p361, %p362
      %p364 = scmp.ne.s32.totalorder %s356, %s359
      %p365 = scmp.eq.s32.totalorder %s26, 0
      %p366 = por %p364, %p365
      %p367 = scmp.ne.s32.totalorder %s356, %s359
      %p368 = scmp.eq.s32.totalorder %s31, 1
      %p369 = por %p367, %p368
      %p370 = scmp.ne.s32.totalorder %s359, %s360
      %p371 = scmp.eq.s32.totalorder %s31, 0
      %p372 = por %p370, %p371
      %p373 = scmp.ne.s32.totalorder %s359, %s360
      %p374 = scmp.eq.s32.totalorder %s32, 1
      %p375 = por %p373, %p374
      %p377 = scmp.ne.s32.totalorder %s360, %s376
      %p378 = scmp.eq.s32.totalorder %s32, 0
      %p379 = por %p377, %p378
      %p380 = scmp.le.s32.totalorder 1, %s26
      %p381 = scmp.lt.s32.totalorder %s26, 3
      %p382 = pnand %p380, %p381
      %p383 = pneg %p382
      // Predicated region
      $region9: #{tpu_custom_call.1} parent=5 // pred_check
        _
      $region10: #{tpu_custom_call.1} parent=5 // pred_check_branch
        %385 = sbr.rel (%p382) target = $region12
      $region11: #{tpu_custom_call.1} parent=5 // pred_region
        %s386 = ssub.s32 %s26, 1
        // Predicated region
        $region13: #{tpu_custom_call.1} parent=11 // pred_check
          %p387 = pneg %p73
        $region14: #{tpu_custom_call.1} parent=11 // pred_check_branch
          %389 = sbr.rel (%p387) target = $region16
        $region15: #{tpu_custom_call.1} parent=11 // pred_region
          _
        $region16: #{tpu_custom_call.1} parent=11 // pred_fallthru
          _
        // Predicated region
        $region17: #{tpu_custom_call.1} parent=11 // pred_check
          %p390 = pneg %p94
        $region18: #{tpu_custom_call.1} parent=11 // pred_check_branch
          %392 = sbr.rel (%p390) target = $region20
        $region19: #{tpu_custom_call.1} parent=11 // pred_region
          _
        $region20: #{tpu_custom_call.1} parent=11 // pred_fallthru
          _
        // Predicated region
        $region21: #{tpu_custom_call.1} parent=11 // pred_check
          %p393 = pneg %p115
        $region22: #{tpu_custom_call.1} parent=11 // pred_check_branch
          %395 = sbr.rel (%p393) target = $region24
        $region23: #{tpu_custom_call.1} parent=11 // pred_region
          _
        $region24: #{tpu_custom_call.1} parent=11 // pred_fallthru
          _
        // Predicated region
        $region25: #{tpu_custom_call.1} parent=11 // pred_check
          %p396 = pneg %p136
        $region26: #{tpu_custom_call.1} parent=11 // pred_check_branch
          %398 = sbr.rel (%p396) target = $region28
        $region27: #{tpu_custom_call.1} parent=11 // pred_region
          _
        $region28: #{tpu_custom_call.1} parent=11 // pred_fallthru
          _
        // Predicated region
        $region29: #{tpu_custom_call.1} parent=11 // pred_check
          %p399 = pneg %p157
        $region30: #{tpu_custom_call.1} parent=11 // pred_check_branch
          %401 = sbr.rel (%p399) target = $region32
        $region31: #{tpu_custom_call.1} parent=11 // pred_region
          _
        $region32: #{tpu_custom_call.1} parent=11 // pred_fallthru
          _
        // Predicated region
        $region33: #{tpu_custom_call.1} parent=11 // pred_check
          %p402 = pneg %p178
        $region34: #{tpu_custom_call.1} parent=11 // pred_check_branch
          %404 = sbr.rel (%p402) target = $region36
        $region35: #{tpu_custom_call.1} parent=11 // pred_region
          _
        $region36: #{tpu_custom_call.1} parent=11 // pred_fallthru
          _
        // Predicated region
        $region37: #{tpu_custom_call.1} parent=11 // pred_check
          %p405 = pneg %p199
        $region38: #{tpu_custom_call.1} parent=11 // pred_check_branch
          %407 = sbr.rel (%p405) target = $region40
        $region39: #{tpu_custom_call.1} parent=11 // pred_region
          _
        $region40: #{tpu_custom_call.1} parent=11 // pred_fallthru
          _
        // Predicated region
        $region41: #{tpu_custom_call.1} parent=11 // pred_check
          %p408 = pneg %p220
        $region42: #{tpu_custom_call.1} parent=11 // pred_check_branch
          %410 = sbr.rel (%p408) target = $region44
        $region43: #{tpu_custom_call.1} parent=11 // pred_region
          _
        $region44: #{tpu_custom_call.1} parent=11 // pred_fallthru
          _
        // Predicated region
        $region45: #{tpu_custom_call.1} parent=11 // pred_check
          %p411 = pneg %p241
        $region46: #{tpu_custom_call.1} parent=11 // pred_check_branch
          %413 = sbr.rel (%p411) target = $region48
        $region47: #{tpu_custom_call.1} parent=11 // pred_region
          _
        $region48: #{tpu_custom_call.1} parent=11 // pred_fallthru
          _
        // Predicated region
        $region49: #{tpu_custom_call.1} parent=11 // pred_check
          %p414 = pneg %p262
        $region50: #{tpu_custom_call.1} parent=11 // pred_check_branch
          %416 = sbr.rel (%p414) target = $region52
        $region51: #{tpu_custom_call.1} parent=11 // pred_region
          _
        $region52: #{tpu_custom_call.1} parent=11 // pred_fallthru
          _
        // Predicated region
        $region53: #{tpu_custom_call.1} parent=11 // pred_check
          %p417 = pneg %p283
        $region54: #{tpu_custom_call.1} parent=11 // pred_check_branch
          %419 = sbr.rel (%p417) target = $region56
        $region55: #{tpu_custom_call.1} parent=11 // pred_region
          _
        $region56: #{tpu_custom_call.1} parent=11 // pred_fallthru
          _
        // Predicated region
        $region57: #{tpu_custom_call.1} parent=11 // pred_check
          %p420 = pneg %p304
        $region58: #{tpu_custom_call.1} parent=11 // pred_check_branch
          %422 = sbr.rel (%p420) target = $region60
        $region59: #{tpu_custom_call.1} parent=11 // pred_region
          _
        $region60: #{tpu_custom_call.1} parent=11 // pred_fallthru
          _
        // Predicated region
        $region61: #{tpu_custom_call.1} parent=11 // pred_check
          %p423 = pneg %p325
        $region62: #{tpu_custom_call.1} parent=11 // pred_check_branch
          %425 = sbr.rel (%p423) target = $region64
        $region63: #{tpu_custom_call.1} parent=11 // pred_region
          _
        $region64: #{tpu_custom_call.1} parent=11 // pred_fallthru
          _
        // Predicated region
        $region65: #{tpu_custom_call.1} parent=11 // pred_check
          %p426 = pneg %p346
        $region66: #{tpu_custom_call.1} parent=11 // pred_check_branch
          %428 = sbr.rel (%p426) target = $region68
        $region67: #{tpu_custom_call.1} parent=11 // pred_region
          _
        $region68: #{tpu_custom_call.1} parent=11 // pred_fallthru
          _
      $region12: #{tpu_custom_call.1} parent=5 // pred_fallthru
        _
      %p429 = scmp.lt.s32.totalorder %s26, 2
      // Predicated region
      $region69: #{tpu_custom_call.1} parent=5 // pred_check
        %p430 = pneg %p429
      $region70: #{tpu_custom_call.1} parent=5 // pred_check_branch
        %432 = sbr.rel (%p430) target = $region72
      $region71: #{tpu_custom_call.1} parent=5 // pred_region
        // Predicated region
        $region73: #{tpu_custom_call.1} parent=71 // pred_check
          %p433 = pneg %p46
        $region74: #{tpu_custom_call.1} parent=71 // pred_check_branch
          %435 = sbr.rel (%p433) target = $region76
        $region75: #{tpu_custom_call.1} parent=71 // pred_region
          %s436 = smul.u32 2, %s26
          %p437 = scmp.lt.s32.totalorder %s436, 3
          %s438 = scalar_select %p437, %s436, 3
          %s439 = smul.addr %s438, 2
          %s440 = scalar_lea.vmem %s0, %s439
          %s441 = smul.u32 2, %s26
        $region76: #{tpu_custom_call.1} parent=71 // pred_fallthru
          _
      $region72: #{tpu_custom_call.1} parent=5 // pred_fallthru
        _
      %p442 = scmp.le.s32.totalorder 1, %s26
      %p443 = scmp.lt.s32.totalorder %s26, 3
      %p444 = pnand %p442, %p443
      %p445 = pneg %p444
      // Predicated region
      $region77: #{tpu_custom_call.1} parent=5 // pred_check
        _
      $region78: #{tpu_custom_call.1} parent=5 // pred_check_branch
        %447 = sbr.rel (%p444) target = $region80
      $region79: #{tpu_custom_call.1} parent=5 // pred_region
        %s448 = ssub.s32 %s26, 1
        %s449 = smul.u32 2, %s31
        %p450 = scmp.lt.s32.totalorder %s449, 3
        %s451 = scalar_select %p450, %s449, 3
        %s452 = smul.addr %s451, 2
        %s453 = scalar_lea.vmem %s0, %s452
        %p454 = pneg %p52
        %p455 = pneg %p49
        %p456 = pneg %p73
        %p457 = pneg %p70
        %p458 = pneg %p94
        %p459 = pneg %p91
        %p460 = pneg %p115
        %p461 = pneg %p112
        %p462 = pneg %p136
        %p463 = pneg %p133
        %p464 = pneg %p157
        %p465 = pneg %p154
        %p466 = pneg %p178
        %p467 = pneg %p175
        %p468 = pneg %p199
        %p469 = pneg %p196
        %p470 = pneg %p220
        %p471 = pneg %p217
        %p472 = pneg %p241
        %p473 = pneg %p238
        %p474 = pneg %p262
        %p475 = pneg %p259
        %p476 = pneg %p283
        %p477 = pneg %p280
        %p478 = pneg %p304
        %p479 = pneg %p301
        %p480 = pneg %p325
        %p481 = pneg %p322
        %p482 = pneg %p346
        %p483 = pneg %p343
        %p484 = pneg %p372
        %p485 = pneg %p369
        %s486 = sand.u32 %s359, 1
        %s487 = scalar_lea.sflag [#allocation4], %s486
        %s488 = sand.u32 %s359, 1
        %s489 = smul.addr %s488, 2
        %s490 = scalar_lea.vmem [#allocation3], %s489
        %s491 = smul.u32 2, %s31
        %p492 = scmp.lt.s32.totalorder %s491, 3
        %s493 = scalar_select %p492, %s491, 3
        %s494 = smul.addr %s493, 2
        %s495 = scalar_lea.vmem %s0, %s494
        %s496 = smul.u32 2, %s31
        %s497 = smul.u32 2, %s31
        %v498 = vld [vmem:[%s495] ss:$2 sm:$0x3]
        %s499 = scalar_lea.vmem %s495, 1
        %v500 = vld [vmem:[%s499] ss:$2 sm:$0x3]
        %v501 = vld [vmem:[%s1] sm:$0xff]
        %v502 = vld [vmem:[%s1 + $0x8] sm:$0xff]
        %v503 = vld [vmem:[%s1 + $0x10] sm:$0xff]
        %v504 = vld [vmem:[%s1 + $0x18] sm:$0xff]
        %506 = vset.pattern.permute.xlu0 0
        %507 = vperm.xlu0 %506, %v501
        %v508 = vpop.permute.xlu0 %507
        %511 = vset.pattern.permute.xlu0 0
        %512 = vperm.xlu0 %511, %v502
        %v513 = vpop.permute.xlu0 %512
        %516 = vset.pattern.permute.xlu0 0
        %517 = vperm.xlu0 %516, %v503
        %v518 = vpop.permute.xlu0 %517
        %521 = vset.pattern.permute.xlu0 0
        %522 = vperm.xlu0 %521, %v504
        %v523 = vpop.permute.xlu0 %522
        %v526 = vperm.slane %v498, 0
        %v527 = vperm.slane %v498, 1
        %v530 = vmul.f32 %v508, %v526
        %v531 = vmul.f32 %v508, %v527
        %v532 = vmul.f32 %v513, %v526
        %v533 = vmul.f32 %v513, %v527
        %v534 = vmul.f32 %v518, %v526
        %v535 = vmul.f32 %v518, %v527
        %v536 = vmul.f32 %v523, %v526
        %v537 = vmul.f32 %v523, %v527
        %v538 = vld [vmem:[%s2] sm:$0xff]
        %v539 = vld [vmem:[%s2 + $0x8] sm:$0xff]
        %v540 = vld [vmem:[%s2 + $0x10] sm:$0xff]
        %v541 = vld [vmem:[%s2 + $0x18] sm:$0xff]
        %543 = vset.pattern.permute.xlu0 0
        %544 = vperm.xlu0 %543, %v538
        %v545 = vpop.permute.xlu0 %544
        %548 = vset.pattern.permute.xlu0 0
        %549 = vperm.xlu0 %548, %v539
        %v550 = vpop.permute.xlu0 %549
        %553 = vset.pattern.permute.xlu0 0
        %554 = vperm.xlu0 %553, %v540
        %v555 = vpop.permute.xlu0 %554
        %558 = vset.pattern.permute.xlu0 0
        %559 = vperm.xlu0 %558, %v541
        %v560 = vpop.permute.xlu0 %559
        %v563 = vperm.slane %v500, 0
        %v564 = vperm.slane %v500, 1
        %v567 = vmul.f32 %v545, %v563
        %v568 = vmul.f32 %v545, %v564
        %v569 = vmul.f32 %v550, %v563
        %v570 = vmul.f32 %v550, %v564
        %v571 = vmul.f32 %v555, %v563
        %v572 = vmul.f32 %v555, %v564
        %v573 = vmul.f32 %v560, %v563
        %v574 = vmul.f32 %v560, %v564
        %v575 = vadd.f32 %v530, %v567
        %v576 = vadd.f32 %v531, %v568
        %v577 = vadd.f32 %v532, %v569
        %v578 = vadd.f32 %v533, %v570
        %v579 = vadd.f32 %v534, %v571
        %v580 = vadd.f32 %v535, %v572
        %v581 = vadd.f32 %v536, %v573
        %v582 = vadd.f32 %v537, %v574
        %v583 = vld [vmem:[%s3] sm:$0xff]
        %v584 = vld [vmem:[%s3 + $0x8] sm:$0xff]
        %v585 = vld [vmem:[%s3 + $0x10] sm:$0xff]
        %v586 = vld [vmem:[%s3 + $0x18] sm:$0xff]
        %588 = vset.pattern.permute.xlu0 0
        %589 = vperm.xlu0 %588, %v583
        %v590 = vpop.permute.xlu0 %589
        %593 = vset.pattern.permute.xlu0 0
        %594 = vperm.xlu0 %593, %v584
        %v595 = vpop.permute.xlu0 %594
        %598 = vset.pattern.permute.xlu0 0
        %599 = vperm.xlu0 %598, %v585
        %v600 = vpop.permute.xlu0 %599
        %603 = vset.pattern.permute.xlu0 0
        %604 = vperm.xlu0 %603, %v586
        %v605 = vpop.permute.xlu0 %604
        %v607 = vadd.f32 %v575, %v590
        %v608 = vadd.f32 %v576, %v590
        %v609 = vadd.f32 %v577, %v595
        %v610 = vadd.f32 %v578, %v595
        %v611 = vadd.f32 %v579, %v600
        %v612 = vadd.f32 %v580, %v600
        %v613 = vadd.f32 %v581, %v605
        %v614 = vadd.f32 %v582, %v605
        %v615 = vmul.f32 %v607, 0.63661975
        %v616 = vmul.f32 %v608, 0.63661975
        %v617 = vmul.f32 %v609, 0.63661975
        %v618 = vmul.f32 %v610, 0.63661975
        %v619 = vmul.f32 %v611, 0.63661975
        %v620 = vmul.f32 %v612, 0.63661975
        %v621 = vmul.f32 %v613, 0.63661975
        %v622 = vmul.f32 %v614, 0.63661975
        %v623 = vround.ne.pseudo %v615
        %v624 = vround.ne.pseudo %v616
        %v625 = vround.ne.pseudo %v617
        %v626 = vround.ne.pseudo %v618
        %v627 = vround.ne.pseudo %v619
        %v628 = vround.ne.pseudo %v620
        %v629 = vround.ne.pseudo %v621
        %v630 = vround.ne.pseudo %v622
        %v631 = vmul.f32 %v623, 1.5703125
        %v632 = vmul.f32 %v624, 1.5703125
        %v633 = vmul.f32 %v625, 1.5703125
        %v634 = vmul.f32 %v626, 1.5703125
        %v635 = vmul.f32 %v627, 1.5703125
        %v636 = vmul.f32 %v628, 1.5703125
        %v637 = vmul.f32 %v629, 1.5703125
        %v638 = vmul.f32 %v630, 1.5703125
        %v639 = vsub.f32 %v607, %v631
        %v640 = vsub.f32 %v608, %v632
        %v641 = vsub.f32 %v609, %v633
        %v642 = vsub.f32 %v610, %v634
        %v643 = vsub.f32 %v611, %v635
        %v644 = vsub.f32 %v612, %v636
        %v645 = vsub.f32 %v613, %v637
        %v646 = vsub.f32 %v614, %v638
        %v647 = vmul.f32 %v623, 0.0004837513
        %v648 = vmul.f32 %v624, 0.0004837513
        %v649 = vmul.f32 %v625, 0.0004837513
        %v650 = vmul.f32 %v626, 0.0004837513
        %v651 = vmul.f32 %v627, 0.0004837513
        %v652 = vmul.f32 %v628, 0.0004837513
        %v653 = vmul.f32 %v629, 0.0004837513
        %v654 = vmul.f32 %v630, 0.0004837513
        %v655 = vsub.f32 %v639, %v647
        %v656 = vsub.f32 %v640, %v648
        %v657 = vsub.f32 %v641, %v649
        %v658 = vsub.f32 %v642, %v650
        %v659 = vsub.f32 %v643, %v651
        %v660 = vsub.f32 %v644, %v652
        %v661 = vsub.f32 %v645, %v653
        %v662 = vsub.f32 %v646, %v654
        %v663 = vmul.f32 %v623, 7.54979e-08
        %v664 = vmul.f32 %v624, 7.54979e-08
        %v665 = vmul.f32 %v625, 7.54979e-08
        %v666 = vmul.f32 %v626, 7.54979e-08
        %v667 = vmul.f32 %v627, 7.54979e-08
        %v668 = vmul.f32 %v628, 7.54979e-08
        %v669 = vmul.f32 %v629, 7.54979e-08
        %v670 = vmul.f32 %v630, 7.54979e-08
        %v671 = vsub.f32 %v655, %v663
        %v672 = vsub.f32 %v656, %v664
        %v673 = vsub.f32 %v657, %v665
        %v674 = vsub.f32 %v658, %v666
        %v675 = vsub.f32 %v659, %v667
        %v676 = vsub.f32 %v660, %v668
        %v677 = vsub.f32 %v661, %v669
        %v678 = vsub.f32 %v662, %v670
        %v679 = vmul.f32 %v671, %v671
        %v680 = vmul.f32 %v672, %v672
        %v681 = vmul.f32 %v673, %v673
        %v682 = vmul.f32 %v674, %v674
        %v683 = vmul.f32 %v675, %v675
        %v684 = vmul.f32 %v676, %v676
        %v685 = vmul.f32 %v677, %v677
        %v686 = vmul.f32 %v678, %v678
        %v687 = vmul.f32 %v679, -0.00019515296
        %v688 = vmul.f32 %v680, -0.00019515296
        %v689 = vmul.f32 %v681, -0.00019515296
        %v690 = vmul.f32 %v682, -0.00019515296
        %v691 = vmul.f32 %v683, -0.00019515296
        %v692 = vmul.f32 %v684, -0.00019515296
        %v693 = vmul.f32 %v685, -0.00019515296
        %v694 = vmul.f32 %v686, -0.00019515296
        %v695 = vadd.f32 %v687, 0.008332161
        %v696 = vadd.f32 %v688, 0.008332161
        %v697 = vadd.f32 %v689, 0.008332161
        %v698 = vadd.f32 %v690, 0.008332161
        %v699 = vadd.f32 %v691, 0.008332161
        %v700 = vadd.f32 %v692, 0.008332161
        %v701 = vadd.f32 %v693, 0.008332161
        %v702 = vadd.f32 %v694, 0.008332161
        %v703 = vmul.f32 %v695, %v679
        %v704 = vmul.f32 %v696, %v680
        %v705 = vmul.f32 %v697, %v681
        %v706 = vmul.f32 %v698, %v682
        %v707 = vmul.f32 %v699, %v683
        %v708 = vmul.f32 %v700, %v684
        %v709 = vmul.f32 %v701, %v685
        %v710 = vmul.f32 %v702, %v686
        %v711 = vsub.f32 %v703, 0.16666655
        %v712 = vsub.f32 %v704, 0.16666655
        %v713 = vsub.f32 %v705, 0.16666655
        %v714 = vsub.f32 %v706, 0.16666655
        %v715 = vsub.f32 %v707, 0.16666655
        %v716 = vsub.f32 %v708, 0.16666655
        %v717 = vsub.f32 %v709, 0.16666655
        %v718 = vsub.f32 %v710, 0.16666655
        %v719 = vmul.f32 %v711, %v679
        %v720 = vmul.f32 %v712, %v680
        %v721 = vmul.f32 %v713, %v681
        %v722 = vmul.f32 %v714, %v682
        %v723 = vmul.f32 %v715, %v683
        %v724 = vmul.f32 %v716, %v684
        %v725 = vmul.f32 %v717, %v685
        %v726 = vmul.f32 %v718, %v686
        %v727 = vmul.f32 %v719, %v671
        %v728 = vmul.f32 %v720, %v672
        %v729 = vmul.f32 %v721, %v673
        %v730 = vmul.f32 %v722, %v674
        %v731 = vmul.f32 %v723, %v675
        %v732 = vmul.f32 %v724, %v676
        %v733 = vmul.f32 %v725, %v677
        %v734 = vmul.f32 %v726, %v678
        %v735 = vadd.f32 %v727, %v671
        %v736 = vadd.f32 %v728, %v672
        %v737 = vadd.f32 %v729, %v673
        %v738 = vadd.f32 %v730, %v674
        %v739 = vadd.f32 %v731, %v675
        %v740 = vadd.f32 %v732, %v676
        %v741 = vadd.f32 %v733, %v677
        %v742 = vadd.f32 %v734, %v678
        %v743 = vmul.f32 %v679, 2.4433157e-05
        %v744 = vmul.f32 %v680, 2.4433157e-05
        %v745 = vmul.f32 %v681, 2.4433157e-05
        %v746 = vmul.f32 %v682, 2.4433157e-05
        %v747 = vmul.f32 %v683, 2.4433157e-05
        %v748 = vmul.f32 %v684, 2.4433157e-05
        %v749 = vmul.f32 %v685, 2.4433157e-05
        %v750 = vmul.f32 %v686, 2.4433157e-05
        %v751 = vsub.f32 %v743, 0.0013887316
        %v752 = vsub.f32 %v744, 0.0013887316
        %v753 = vsub.f32 %v745, 0.0013887316
        %v754 = vsub.f32 %v746, 0.0013887316
        %v755 = vsub.f32 %v747, 0.0013887316
        %v756 = vsub.f32 %v748, 0.0013887316
        %v757 = vsub.f32 %v749, 0.0013887316
        %v758 = vsub.f32 %v750, 0.0013887316
        %v759 = vmul.f32 %v751, %v679
        %v760 = vmul.f32 %v752, %v680
        %v761 = vmul.f32 %v753, %v681
        %v762 = vmul.f32 %v754, %v682
        %v763 = vmul.f32 %v755, %v683
        %v764 = vmul.f32 %v756, %v684
        %v765 = vmul.f32 %v757, %v685
        %v766 = vmul.f32 %v758, %v686
        %v767 = vadd.f32 %v759, 0.041666646
        %v768 = vadd.f32 %v760, 0.041666646
        %v769 = vadd.f32 %v761, 0.041666646
        %v770 = vadd.f32 %v762, 0.041666646
        %v771 = vadd.f32 %v763, 0.041666646
        %v772 = vadd.f32 %v764, 0.041666646
        %v773 = vadd.f32 %v765, 0.041666646
        %v774 = vadd.f32 %v766, 0.041666646
        %v775 = vmul.f32 %v679, %v679
        %v776 = vmul.f32 %v680, %v680
        %v777 = vmul.f32 %v681, %v681
        %v778 = vmul.f32 %v682, %v682
        %v779 = vmul.f32 %v683, %v683
        %v780 = vmul.f32 %v684, %v684
        %v781 = vmul.f32 %v685, %v685
        %v782 = vmul.f32 %v686, %v686
        %v783 = vmul.f32 %v767, %v775
        %v784 = vmul.f32 %v768, %v776
        %v785 = vmul.f32 %v769, %v777
        %v786 = vmul.f32 %v770, %v778
        %v787 = vmul.f32 %v771, %v779
        %v788 = vmul.f32 %v772, %v780
        %v789 = vmul.f32 %v773, %v781
        %v790 = vmul.f32 %v774, %v782
        %v791 = vmul.f32 %v679, 0.5
        %v792 = vmul.f32 %v680, 0.5
        %v793 = vmul.f32 %v681, 0.5
        %v794 = vmul.f32 %v682, 0.5
        %v795 = vmul.f32 %v683, 0.5
        %v796 = vmul.f32 %v684, 0.5
        %v797 = vmul.f32 %v685, 0.5
        %v798 = vmul.f32 %v686, 0.5
        %v799 = vsub.f32 %v783, %v791
        %v800 = vsub.f32 %v784, %v792
        %v801 = vsub.f32 %v785, %v793
        %v802 = vsub.f32 %v786, %v794
        %v803 = vsub.f32 %v787, %v795
        %v804 = vsub.f32 %v788, %v796
        %v805 = vsub.f32 %v789, %v797
        %v806 = vsub.f32 %v790, %v798
        %v807 = vadd.f32 %v799, 1.0
        %v808 = vadd.f32 %v800, 1.0
        %v809 = vadd.f32 %v801, 1.0
        %v810 = vadd.f32 %v802, 1.0
        %v811 = vadd.f32 %v803, 1.0
        %v812 = vadd.f32 %v804, 1.0
        %v813 = vadd.f32 %v805, 1.0
        %v814 = vadd.f32 %v806, 1.0
        %v815 = vcvt.f32.s32.ties.to.even %v615
        %v816 = vcvt.f32.s32.ties.to.even %v616
        %v817 = vcvt.f32.s32.ties.to.even %v617
        %v818 = vcvt.f32.s32.ties.to.even %v618
        %v819 = vcvt.f32.s32.ties.to.even %v619
        %v820 = vcvt.f32.s32.ties.to.even %v620
        %v821 = vcvt.f32.s32.ties.to.even %v621
        %v822 = vcvt.f32.s32.ties.to.even %v622
        %v823 = vand.u32 %v815, 1
        %v824 = vand.u32 %v816, 1
        %v825 = vand.u32 %v817, 1
        %v826 = vand.u32 %v818, 1
        %v827 = vand.u32 %v819, 1
        %v828 = vand.u32 %v820, 1
        %v829 = vand.u32 %v821, 1
        %v830 = vand.u32 %v822, 1
        %vm831 = vcmp.eq.s32.totalorder %v823, 1
        %vm832 = vcmp.eq.s32.totalorder %v824, 1
        %vm833 = vcmp.eq.s32.totalorder %v825, 1
        %vm834 = vcmp.eq.s32.totalorder %v826, 1
        %vm835 = vcmp.eq.s32.totalorder %v827, 1
        %vm836 = vcmp.eq.s32.totalorder %v828, 1
        %vm837 = vcmp.eq.s32.totalorder %v829, 1
        %vm838 = vcmp.eq.s32.totalorder %v830, 1
        %v839 = vsel %vm831, %v807, %v735
        %v840 = vsel %vm832, %v808, %v736
        %v841 = vsel %vm833, %v809, %v737
        %v842 = vsel %vm834, %v810, %v738
        %v843 = vsel %vm835, %v811, %v739
        %v844 = vsel %vm836, %v812, %v740
        %v845 = vsel %vm837, %v813, %v741
        %v846 = vsel %vm838, %v814, %v742
        %v847 = vsel %vm831, %v735, %v807
        %v848 = vsel %vm832, %v736, %v808
        %v849 = vsel %vm833, %v737, %v809
        %v850 = vsel %vm834, %v738, %v810
        %v851 = vsel %vm835, %v739, %v811
        %v852 = vsel %vm836, %v740, %v812
        %v853 = vsel %vm837, %v741, %v813
        %v854 = vsel %vm838, %v742, %v814
        %v855 = vand.u32 %v815, 2
        %v856 = vand.u32 %v816, 2
        %v857 = vand.u32 %v817, 2
        %v858 = vand.u32 %v818, 2
        %v859 = vand.u32 %v819, 2
        %v860 = vand.u32 %v820, 2
        %v861 = vand.u32 %v821, 2
        %v862 = vand.u32 %v822, 2
        %vm863 = vcmp.ne.s32.totalorder %v855, 0
        %vm864 = vcmp.ne.s32.totalorder %v856, 0
        %vm865 = vcmp.ne.s32.totalorder %v857, 0
        %vm866 = vcmp.ne.s32.totalorder %v858, 0
        %vm867 = vcmp.ne.s32.totalorder %v859, 0
        %vm868 = vcmp.ne.s32.totalorder %v860, 0
        %vm869 = vcmp.ne.s32.totalorder %v861, 0
        %vm870 = vcmp.ne.s32.totalorder %v862, 0
        %v871 = vsub.f32 0.0, %v839
        %v872 = vsub.f32 0.0, %v840
        %v873 = vsub.f32 0.0, %v841
        %v874 = vsub.f32 0.0, %v842
        %v875 = vsub.f32 0.0, %v843
        %v876 = vsub.f32 0.0, %v844
        %v877 = vsub.f32 0.0, %v845
        %v878 = vsub.f32 0.0, %v846
        %v879 = vsel %vm863, %v871, %v839
        %v880 = vsel %vm864, %v872, %v840
        %v881 = vsel %vm865, %v873, %v841
        %v882 = vsel %vm866, %v874, %v842
        %v883 = vsel %vm867, %v875, %v843
        %v884 = vsel %vm868, %v876, %v844
        %v885 = vsel %vm869, %v877, %v845
        %v886 = vsel %vm870, %v878, %v846
        %v887 = vadd.s32 %v815, 1
        %v888 = vadd.s32 %v816, 1
        %v889 = vadd.s32 %v817, 1
        %v890 = vadd.s32 %v818, 1
        %v891 = vadd.s32 %v819, 1
        %v892 = vadd.s32 %v820, 1
        %v893 = vadd.s32 %v821, 1
        %v894 = vadd.s32 %v822, 1
        %v895 = vand.u32 %v887, 2
        %v896 = vand.u32 %v888, 2
        %v897 = vand.u32 %v889, 2
        %v898 = vand.u32 %v890, 2
        %v899 = vand.u32 %v891, 2
        %v900 = vand.u32 %v892, 2
        %v901 = vand.u32 %v893, 2
        %v902 = vand.u32 %v894, 2
        %vm903 = vcmp.ne.s32.totalorder %v895, 0
        %vm904 = vcmp.ne.s32.totalorder %v896, 0
        %vm905 = vcmp.ne.s32.totalorder %v897, 0
        %vm906 = vcmp.ne.s32.totalorder %v898, 0
        %vm907 = vcmp.ne.s32.totalorder %v899, 0
        %vm908 = vcmp.ne.s32.totalorder %v900, 0
        %vm909 = vcmp.ne.s32.totalorder %v901, 0
        %vm910 = vcmp.ne.s32.totalorder %v902, 0
        %v911 = vsub.f32 0.0, %v847
        %v912 = vsub.f32 0.0, %v848
        %v913 = vsub.f32 0.0, %v849
        %v914 = vsub.f32 0.0, %v850
        %v915 = vsub.f32 0.0, %v851
        %v916 = vsub.f32 0.0, %v852
        %v917 = vsub.f32 0.0, %v853
        %v918 = vsub.f32 0.0, %v854
        %v919 = vsel %vm903, %v911, %v847
        %v920 = vsel %vm904, %v912, %v848
        %v921 = vsel %vm905, %v913, %v849
        %v922 = vsel %vm906, %v914, %v850
        %v923 = vsel %vm907, %v915, %v851
        %v924 = vsel %vm908, %v916, %v852
        %v925 = vsel %vm909, %v917, %v853
        %v926 = vsel %vm910, %v918, %v854
        %v927 = vld [vmem:[%s4] sm:$0xff]
        %v928 = vld [vmem:[%s4 + $0x8] sm:$0xff]
        %v929 = vld [vmem:[%s4 + $0x10] sm:$0xff]
        %v930 = vld [vmem:[%s4 + $0x18] sm:$0xff]
        %v931 = vld [vmem:[%s5] sm:$0xff]
        %v932 = vld [vmem:[%s5 + $0x8] sm:$0xff]
        %v933 = vld [vmem:[%s5 + $0x10] sm:$0xff]
        %v934 = vld [vmem:[%s5 + $0x18] sm:$0xff]
        %vm935 = vcmask 261120
        %v937 = vsel %vm935, %v931, 0
        %v940 = vsel %vm935, %v932, 0
        %v943 = vsel %vm935, %v933, 0
        %v946 = vsel %vm935, %v934, 0
        %948 = vmatpush.msra.mxu0 0.0
        %949 = vmatpush.msra.mxu0 0.0
        %950 = vmatpush.msra.mxu0 0.0
        %951 = vmatpush.msra.mxu0 0.0
        %952 = vmatpush.msra.mxu0 0.0
        %953 = vmatpush.msra.mxu0 0.0
        %954 = vmatpush.msra.mxu0 0.0
        %955 = vmatpush.msra.mxu0 0.0
        %956 = vmatpush.msra.mxu0 0.0
        %957 = vmatpush.msra.mxu0 0.0
        %958 = vmatpush.msra.mxu0 0.0
        %959 = vmatpush.msra.mxu0 0.0
        %960 = vmatpush.msra.mxu0 %v925
        %961 = vmatpush.msra.mxu0 %v923
        %962 = vmatpush.msra.mxu0 %v921
        %963 = vmatpush.msra.mxu0 %v919
        %964 = vmatmul.f32.gmra.mxu0 %v937
        %v965 = vpop.f32.mrf.mxu0
        %v966 = vadd.f32 0.0, %v965
        %967 = vmatmul.f32.gmra.mxu0 %v940
        %v968 = vpop.f32.mrf.mxu0
        %v969 = vadd.f32 0.0, %v968
        %970 = vmatmul.f32.gmra.mxu0 %v943
        %v971 = vpop.f32.mrf.mxu0
        %v972 = vadd.f32 0.0, %v971
        %973 = vmatmul.f32.gmra.mxu0 %v946
        %v974 = vpop.f32.mrf.mxu0
        %v975 = vadd.f32 0.0, %v974
        %976 = vdwg.mxu0
        %977 = vmatpush.msra.mxu0 0.0
        %978 = vmatpush.msra.mxu0 0.0
        %979 = vmatpush.msra.mxu0 0.0
        %980 = vmatpush.msra.mxu0 0.0
        %981 = vmatpush.msra.mxu0 0.0
        %982 = vmatpush.msra.mxu0 0.0
        %983 = vmatpush.msra.mxu0 0.0
        %984 = vmatpush.msra.mxu0 0.0
        %985 = vmatpush.msra.mxu0 0.0
        %986 = vmatpush.msra.mxu0 0.0
        %987 = vmatpush.msra.mxu0 0.0
        %988 = vmatpush.msra.mxu0 0.0
        %989 = vmatpush.msra.mxu0 %v926
        %990 = vmatpush.msra.mxu0 %v924
        %991 = vmatpush.msra.mxu0 %v922
        %992 = vmatpush.msra.mxu0 %v920
        %993 = vmatmul.f32.gmra.mxu0 %v937
        %v994 = vpop.f32.mrf.mxu0
        %v995 = vadd.f32 0.0, %v994
        %996 = vmatmul.f32.gmra.mxu0 %v940
        %v997 = vpop.f32.mrf.mxu0
        %v998 = vadd.f32 0.0, %v997
        %999 = vmatmul.f32.gmra.mxu0 %v943
        %v1000 = vpop.f32.mrf.mxu0
        %v1001 = vadd.f32 0.0, %v1000
        %1002 = vmatmul.f32.gmra.mxu0 %v946
        %v1003 = vpop.f32.mrf.mxu0
        %v1004 = vadd.f32 0.0, %v1003
        %1005 = vdwg.mxu0
        %v1007 = vsel %vm935, %v927, 0
        %v1010 = vsel %vm935, %v928, 0
        %v1013 = vsel %vm935, %v929, 0
        %v1016 = vsel %vm935, %v930, 0
        %1018 = vmatpush.msra.mxu0 0.0
        %1019 = vmatpush.msra.mxu0 0.0
        %1020 = vmatpush.msra.mxu0 0.0
        %1021 = vmatpush.msra.mxu0 0.0
        %1022 = vmatpush.msra.mxu0 0.0
        %1023 = vmatpush.msra.mxu0 0.0
        %1024 = vmatpush.msra.mxu0 0.0
        %1025 = vmatpush.msra.mxu0 0.0
        %1026 = vmatpush.msra.mxu0 0.0
        %1027 = vmatpush.msra.mxu0 0.0
        %1028 = vmatpush.msra.mxu0 0.0
        %1029 = vmatpush.msra.mxu0 0.0
        %1030 = vmatpush.msra.mxu0 %v885
        %1031 = vmatpush.msra.mxu0 %v883
        %1032 = vmatpush.msra.mxu0 %v881
        %1033 = vmatpush.msra.mxu0 %v879
        %1034 = vmatmul.f32.gmra.mxu0 %v1007
        %v1035 = vpop.f32.mrf.mxu0
        %v1036 = vadd.f32 %v966, %v1035
        %1037 = vmatmul.f32.gmra.mxu0 %v1010
        %v1038 = vpop.f32.mrf.mxu0
        %v1039 = vadd.f32 %v969, %v1038
        %1040 = vmatmul.f32.gmra.mxu0 %v1013
        %v1041 = vpop.f32.mrf.mxu0
        %v1042 = vadd.f32 %v972, %v1041
        %1043 = vmatmul.f32.gmra.mxu0 %v1016
        %v1044 = vpop.f32.mrf.mxu0
        %v1045 = vadd.f32 %v975, %v1044
        %1046 = vdwg.mxu0
        %1047 = vmatpush.msra.mxu0 0.0
        %1048 = vmatpush.msra.mxu0 0.0
        %1049 = vmatpush.msra.mxu0 0.0
        %1050 = vmatpush.msra.mxu0 0.0
        %1051 = vmatpush.msra.mxu0 0.0
        %1052 = vmatpush.msra.mxu0 0.0
        %1053 = vmatpush.msra.mxu0 0.0
        %1054 = vmatpush.msra.mxu0 0.0
        %1055 = vmatpush.msra.mxu0 0.0
        %1056 = vmatpush.msra.mxu0 0.0
        %1057 = vmatpush.msra.mxu0 0.0
        %1058 = vmatpush.msra.mxu0 0.0
        %1059 = vmatpush.msra.mxu0 %v886
        %1060 = vmatpush.msra.mxu0 %v884
        %1061 = vmatpush.msra.mxu0 %v882
        %1062 = vmatpush.msra.mxu0 %v880
        %1063 = vmatmul.f32.gmra.mxu0 %v1007
        %v1064 = vpop.f32.mrf.mxu0
        %v1065 = vadd.f32 %v995, %v1064
        %1066 = vmatmul.f32.gmra.mxu0 %v1010
        %v1067 = vpop.f32.mrf.mxu0
        %v1068 = vadd.f32 %v998, %v1067
        %1069 = vmatmul.f32.gmra.mxu0 %v1013
        %v1070 = vpop.f32.mrf.mxu0
        %v1071 = vadd.f32 %v1001, %v1070
        %1072 = vmatmul.f32.gmra.mxu0 %v1016
        %v1073 = vpop.f32.mrf.mxu0
        %v1074 = vadd.f32 %v1004, %v1073
        %1075 = vdwg.mxu0
        %v1076 = vld [vmem:[%s6] sm:$0xff]
        %v1077 = vld [vmem:[%s6 + $0x8] sm:$0xff]
        %v1078 = vld [vmem:[%s6 + $0x10] sm:$0xff]
        %v1079 = vld [vmem:[%s6 + $0x18] sm:$0xff]
        %1081 = vset.pattern.permute.xlu0 0
        %1082 = vperm.xlu0 %1081, %v1076
        %v1083 = vpop.permute.xlu0 %1082
        %1086 = vset.pattern.permute.xlu0 0
        %1087 = vperm.xlu0 %1086, %v1077
        %v1088 = vpop.permute.xlu0 %1087
        %1091 = vset.pattern.permute.xlu0 0
        %1092 = vperm.xlu0 %1091, %v1078
        %v1093 = vpop.permute.xlu0 %1092
        %1096 = vset.pattern.permute.xlu0 0
        %1097 = vperm.xlu0 %1096, %v1079
        %v1098 = vpop.permute.xlu0 %1097
        %v1100 = vadd.f32 %v1036, %v1083
        %v1101 = vadd.f32 %v1065, %v1083
        %v1102 = vadd.f32 %v1039, %v1088
        %v1103 = vadd.f32 %v1068, %v1088
        %v1104 = vadd.f32 %v1042, %v1093
        %v1105 = vadd.f32 %v1071, %v1093
        %v1106 = vadd.f32 %v1045, %v1098
        %v1107 = vadd.f32 %v1074, %v1098
        %v1108 = vmul.f32 %v1100, 0.70710677
        %v1109 = vmul.f32 %v1101, 0.70710677
        %v1110 = vmul.f32 %v1102, 0.70710677
        %v1111 = vmul.f32 %v1103, 0.70710677
        %v1112 = vmul.f32 %v1104, 0.70710677
        %v1113 = vmul.f32 %v1105, 0.70710677
        %v1114 = vmul.f32 %v1106, 0.70710677
        %v1115 = vmul.f32 %v1107, 0.70710677
        %v1116 = vmul.f32 %v1100, %v1100
        %v1117 = vmin.f32 16.0, %v1116
        %v1118 = vmul.f32 %v1117, 2.1237322e-06
        %v1119 = vadd.f32 %v1118, 0.00028619796
        %v1120 = vmul.f32 %v1117, %v1119
        %v1121 = vadd.f32 %v1120, 0.0036580483
        %v1122 = vmul.f32 %v1117, %v1121
        %v1123 = vadd.f32 %v1122, 0.05243302
        %v1124 = vmul.f32 %v1117, %v1123
        %v1125 = vadd.f32 %v1124, 0.18741608
        %v1126 = vmul.f32 %v1117, %v1125
        %v1127 = vadd.f32 %v1126, 1.1283791
        %v1128 = vmul.f32 %v1100, %v1127
        %v1129 = vmul.f32 %v1117, 3.8918573e-05
        %v1130 = vadd.f32 %v1129, 0.001143296
        %v1131 = vmul.f32 %v1117, %v1130
        %v1132 = vadd.f32 %v1131, 0.014752088
        %v1133 = vmul.f32 %v1117, %v1132
        %v1134 = vadd.f32 %v1133, 0.112945676
        %v1135 = vmul.f32 %v1117, %v1134
        %v1136 = vadd.f32 %v1135, 0.4994258
        %v1137 = vmul.f32 %v1117, %v1136
        %v1138 = vadd.f32 %v1137, 1.0
        %v1139 = vrcp.pop %v1138
        %v1140 = vmul.f32 %v1138, %v1139
        %v1141 = vsub.f32 1.0, %v1140
        %v1142 = vmul.f32 %v1139, %v1141
        %v1143 = vadd.f32 %v1139, %v1142
        %vm1144 = vweird.f32 %v1138
        %vm1145 = vweird.f32 %v1139
        %vm1146 = vmor %vm1144, %vm1145
        %v1147 = vsel %vm1146, %v1139, %v1143
        %v1148 = vand.u32 2147483647, %v1138
        %vm1149 = vcmp.eq.f32.partialorder %v1148, 8.507059e+37
        %v1150 = vand.u32 %v1138, 2147483648
        %v1151 = vor.u32 1.1754944e-38, %v1150
        %v1152 = vsel %vm1149, %v1151, %v1147
        %v1153 = vmul.f32 %v1128, %v1152
        %v1154 = vmin.f32 %v1153, 1.0
        %v1155 = vmax.f32 %v1154, -1.0
        %v1156 = vmul.f32 %v1101, %v1101
        %v1157 = vmin.f32 16.0, %v1156
        %v1158 = vmul.f32 %v1157, 2.1237322e-06
        %v1159 = vadd.f32 %v1158, 0.00028619796
        %v1160 = vmul.f32 %v1157, %v1159
        %v1161 = vadd.f32 %v1160, 0.0036580483
        %v1162 = vmul.f32 %v1157, %v1161
        %v1163 = vadd.f32 %v1162, 0.05243302
        %v1164 = vmul.f32 %v1157, %v1163
        %v1165 = vadd.f32 %v1164, 0.18741608
        %v1166 = vmul.f32 %v1157, %v1165
        %v1167 = vadd.f32 %v1166, 1.1283791
        %v1168 = vmul.f32 %v1101, %v1167
        %v1169 = vmul.f32 %v1157, 3.8918573e-05
        %v1170 = vadd.f32 %v1169, 0.001143296
        %v1171 = vmul.f32 %v1157, %v1170
        %v1172 = vadd.f32 %v1171, 0.014752088
        %v1173 = vmul.f32 %v1157, %v1172
        %v1174 = vadd.f32 %v1173, 0.112945676
        %v1175 = vmul.f32 %v1157, %v1174
        %v1176 = vadd.f32 %v1175, 0.4994258
        %v1177 = vmul.f32 %v1157, %v1176
        %v1178 = vadd.f32 %v1177, 1.0
        %v1179 = vrcp.pop %v1178
        %v1180 = vmul.f32 %v1178, %v1179
        %v1181 = vsub.f32 1.0, %v1180
        %v1182 = vmul.f32 %v1179, %v1181
        %v1183 = vadd.f32 %v1179, %v1182
        %vm1184 = vweird.f32 %v1178
        %vm1185 = vweird.f32 %v1179
        %vm1186 = vmor %vm1184, %vm1185
        %v1187 = vsel %vm1186, %v1179, %v1183
        %v1188 = vand.u32 2147483647, %v1178
        %vm1189 = vcmp.eq.f32.partialorder %v1188, 8.507059e+37
        %v1190 = vand.u32 %v1178, 2147483648
        %v1191 = vor.u32 1.1754944e-38, %v1190
        %v1192 = vsel %vm1189, %v1191, %v1187
        %v1193 = vmul.f32 %v1168, %v1192
        %v1194 = vmin.f32 %v1193, 1.0
        %v1195 = vmax.f32 %v1194, -1.0
        %v1196 = vmul.f32 %v1102, %v1102
        %v1197 = vmin.f32 16.0, %v1196
        %v1198 = vmul.f32 %v1197, 2.1237322e-06
        %v1199 = vadd.f32 %v1198, 0.00028619796
        %v1200 = vmul.f32 %v1197, %v1199
        %v1201 = vadd.f32 %v1200, 0.0036580483
        %v1202 = vmul.f32 %v1197, %v1201
        %v1203 = vadd.f32 %v1202, 0.05243302
        %v1204 = vmul.f32 %v1197, %v1203
        %v1205 = vadd.f32 %v1204, 0.18741608
        %v1206 = vmul.f32 %v1197, %v1205
        %v1207 = vadd.f32 %v1206, 1.1283791
        %v1208 = vmul.f32 %v1102, %v1207
        %v1209 = vmul.f32 %v1197, 3.8918573e-05
        %v1210 = vadd.f32 %v1209, 0.001143296
        %v1211 = vmul.f32 %v1197, %v1210
        %v1212 = vadd.f32 %v1211, 0.014752088
        %v1213 = vmul.f32 %v1197, %v1212
        %v1214 = vadd.f32 %v1213, 0.112945676
        %v1215 = vmul.f32 %v1197, %v1214
        %v1216 = vadd.f32 %v1215, 0.4994258
        %v1217 = vmul.f32 %v1197, %v1216
        %v1218 = vadd.f32 %v1217, 1.0
        %v1219 = vrcp.pop %v1218
        %v1220 = vmul.f32 %v1218, %v1219
        %v1221 = vsub.f32 1.0, %v1220
        %v1222 = vmul.f32 %v1219, %v1221
        %v1223 = vadd.f32 %v1219, %v1222
        %vm1224 = vweird.f32 %v1218
        %vm1225 = vweird.f32 %v1219
        %vm1226 = vmor %vm1224, %vm1225
        %v1227 = vsel %vm1226, %v1219, %v1223
        %v1228 = vand.u32 2147483647, %v1218
        %vm1229 = vcmp.eq.f32.partialorder %v1228, 8.507059e+37
        %v1230 = vand.u32 %v1218, 2147483648
        %v1231 = vor.u32 1.1754944e-38, %v1230
        %v1232 = vsel %vm1229, %v1231, %v1227
        %v1233 = vmul.f32 %v1208, %v1232
        %v1234 = vmin.f32 %v1233, 1.0
        %v1235 = vmax.f32 %v1234, -1.0
        %v1236 = vmul.f32 %v1103, %v1103
        %v1237 = vmin.f32 16.0, %v1236
        %v1238 = vmul.f32 %v1237, 2.1237322e-06
        %v1239 = vadd.f32 %v1238, 0.00028619796
        %v1240 = vmul.f32 %v1237, %v1239
        %v1241 = vadd.f32 %v1240, 0.0036580483
        %v1242 = vmul.f32 %v1237, %v1241
        %v1243 = vadd.f32 %v1242, 0.05243302
        %v1244 = vmul.f32 %v1237, %v1243
        %v1245 = vadd.f32 %v1244, 0.18741608
        %v1246 = vmul.f32 %v1237, %v1245
        %v1247 = vadd.f32 %v1246, 1.1283791
        %v1248 = vmul.f32 %v1103, %v1247
        %v1249 = vmul.f32 %v1237, 3.8918573e-05
        %v1250 = vadd.f32 %v1249, 0.001143296
        %v1251 = vmul.f32 %v1237, %v1250
        %v1252 = vadd.f32 %v1251, 0.014752088
        %v1253 = vmul.f32 %v1237, %v1252
        %v1254 = vadd.f32 %v1253, 0.112945676
        %v1255 = vmul.f32 %v1237, %v1254
        %v1256 = vadd.f32 %v1255, 0.4994258
        %v1257 = vmul.f32 %v1237, %v1256
        %v1258 = vadd.f32 %v1257, 1.0
        %v1259 = vrcp.pop %v1258
        %v1260 = vmul.f32 %v1258, %v1259
        %v1261 = vsub.f32 1.0, %v1260
        %v1262 = vmul.f32 %v1259, %v1261
        %v1263 = vadd.f32 %v1259, %v1262
        %vm1264 = vweird.f32 %v1258
        %vm1265 = vweird.f32 %v1259
        %vm1266 = vmor %vm1264, %vm1265
        %v1267 = vsel %vm1266, %v1259, %v1263
        %v1268 = vand.u32 2147483647, %v1258
        %vm1269 = vcmp.eq.f32.partialorder %v1268, 8.507059e+37
        %v1270 = vand.u32 %v1258, 2147483648
        %v1271 = vor.u32 1.1754944e-38, %v1270
        %v1272 = vsel %vm1269, %v1271, %v1267
        %v1273 = vmul.f32 %v1248, %v1272
        %v1274 = vmin.f32 %v1273, 1.0
        %v1275 = vmax.f32 %v1274, -1.0
        %v1276 = vmul.f32 %v1104, %v1104
        %v1277 = vmin.f32 16.0, %v1276
        %v1278 = vmul.f32 %v1277, 2.1237322e-06
        %v1279 = vadd.f32 %v1278, 0.00028619796
        %v1280 = vmul.f32 %v1277, %v1279
        %v1281 = vadd.f32 %v1280, 0.0036580483
        %v1282 = vmul.f32 %v1277, %v1281
        %v1283 = vadd.f32 %v1282, 0.05243302
        %v1284 = vmul.f32 %v1277, %v1283
        %v1285 = vadd.f32 %v1284, 0.18741608
        %v1286 = vmul.f32 %v1277, %v1285
        %v1287 = vadd.f32 %v1286, 1.1283791
        %v1288 = vmul.f32 %v1104, %v1287
        %v1289 = vmul.f32 %v1277, 3.8918573e-05
        %v1290 = vadd.f32 %v1289, 0.001143296
        %v1291 = vmul.f32 %v1277, %v1290
        %v1292 = vadd.f32 %v1291, 0.014752088
        %v1293 = vmul.f32 %v1277, %v1292
        %v1294 = vadd.f32 %v1293, 0.112945676
        %v1295 = vmul.f32 %v1277, %v1294
        %v1296 = vadd.f32 %v1295, 0.4994258
        %v1297 = vmul.f32 %v1277, %v1296
        %v1298 = vadd.f32 %v1297, 1.0
        %v1299 = vrcp.pop %v1298
        %v1300 = vmul.f32 %v1298, %v1299
        %v1301 = vsub.f32 1.0, %v1300
        %v1302 = vmul.f32 %v1299, %v1301
        %v1303 = vadd.f32 %v1299, %v1302
        %vm1304 = vweird.f32 %v1298
        %vm1305 = vweird.f32 %v1299
        %vm1306 = vmor %vm1304, %vm1305
        %v1307 = vsel %vm1306, %v1299, %v1303
        %v1308 = vand.u32 2147483647, %v1298
        %vm1309 = vcmp.eq.f32.partialorder %v1308, 8.507059e+37
        %v1310 = vand.u32 %v1298, 2147483648
        %v1311 = vor.u32 1.1754944e-38, %v1310
        %v1312 = vsel %vm1309, %v1311, %v1307
        %v1313 = vmul.f32 %v1288, %v1312
        %v1314 = vmin.f32 %v1313, 1.0
        %v1315 = vmax.f32 %v1314, -1.0
        %v1316 = vmul.f32 %v1105, %v1105
        %v1317 = vmin.f32 16.0, %v1316
        %v1318 = vmul.f32 %v1317, 2.1237322e-06
        %v1319 = vadd.f32 %v1318, 0.00028619796
        %v1320 = vmul.f32 %v1317, %v1319
        %v1321 = vadd.f32 %v1320, 0.0036580483
        %v1322 = vmul.f32 %v1317, %v1321
        %v1323 = vadd.f32 %v1322, 0.05243302
        %v1324 = vmul.f32 %v1317, %v1323
        %v1325 = vadd.f32 %v1324, 0.18741608
        %v1326 = vmul.f32 %v1317, %v1325
        %v1327 = vadd.f32 %v1326, 1.1283791
        %v1328 = vmul.f32 %v1105, %v1327
        %v1329 = vmul.f32 %v1317, 3.8918573e-05
        %v1330 = vadd.f32 %v1329, 0.001143296
        %v1331 = vmul.f32 %v1317, %v1330
        %v1332 = vadd.f32 %v1331, 0.014752088
        %v1333 = vmul.f32 %v1317, %v1332
        %v1334 = vadd.f32 %v1333, 0.112945676
        %v1335 = vmul.f32 %v1317, %v1334
        %v1336 = vadd.f32 %v1335, 0.4994258
        %v1337 = vmul.f32 %v1317, %v1336
        %v1338 = vadd.f32 %v1337, 1.0
        %v1339 = vrcp.pop %v1338
        %v1340 = vmul.f32 %v1338, %v1339
        %v1341 = vsub.f32 1.0, %v1340
        %v1342 = vmul.f32 %v1339, %v1341
        %v1343 = vadd.f32 %v1339, %v1342
        %vm1344 = vweird.f32 %v1338
        %vm1345 = vweird.f32 %v1339
        %vm1346 = vmor %vm1344, %vm1345
        %v1347 = vsel %vm1346, %v1339, %v1343
        %v1348 = vand.u32 2147483647, %v1338
        %vm1349 = vcmp.eq.f32.partialorder %v1348, 8.507059e+37
        %v1350 = vand.u32 %v1338, 2147483648
        %v1351 = vor.u32 1.1754944e-38, %v1350
        %v1352 = vsel %vm1349, %v1351, %v1347
        %v1353 = vmul.f32 %v1328, %v1352
        %v1354 = vmin.f32 %v1353, 1.0
        %v1355 = vmax.f32 %v1354, -1.0
        %v1356 = vmul.f32 %v1106, %v1106
        %v1357 = vmin.f32 16.0, %v1356
        %v1358 = vmul.f32 %v1357, 2.1237322e-06
        %v1359 = vadd.f32 %v1358, 0.00028619796
        %v1360 = vmul.f32 %v1357, %v1359
        %v1361 = vadd.f32 %v1360, 0.0036580483
        %v1362 = vmul.f32 %v1357, %v1361
        %v1363 = vadd.f32 %v1362, 0.05243302
        %v1364 = vmul.f32 %v1357, %v1363
        %v1365 = vadd.f32 %v1364, 0.18741608
        %v1366 = vmul.f32 %v1357, %v1365
        %v1367 = vadd.f32 %v1366, 1.1283791
        %v1368 = vmul.f32 %v1106, %v1367
        %v1369 = vmul.f32 %v1357, 3.8918573e-05
        %v1370 = vadd.f32 %v1369, 0.001143296
        %v1371 = vmul.f32 %v1357, %v1370
        %v1372 = vadd.f32 %v1371, 0.014752088
        %v1373 = vmul.f32 %v1357, %v1372
        %v1374 = vadd.f32 %v1373, 0.112945676
        %v1375 = vmul.f32 %v1357, %v1374
        %v1376 = vadd.f32 %v1375, 0.4994258
        %v1377 = vmul.f32 %v1357, %v1376
        %v1378 = vadd.f32 %v1377, 1.0
        %v1379 = vrcp.pop %v1378
        %v1380 = vmul.f32 %v1378, %v1379
        %v1381 = vsub.f32 1.0, %v1380
        %v1382 = vmul.f32 %v1379, %v1381
        %v1383 = vadd.f32 %v1379, %v1382
        %vm1384 = vweird.f32 %v1378
        %vm1385 = vweird.f32 %v1379
        %vm1386 = vmor %vm1384, %vm1385
        %v1387 = vsel %vm1386, %v1379, %v1383
        %v1388 = vand.u32 2147483647, %v1378
        %vm1389 = vcmp.eq.f32.partialorder %v1388, 8.507059e+37
        %v1390 = vand.u32 %v1378, 2147483648
        %v1391 = vor.u32 1.1754944e-38, %v1390
        %v1392 = vsel %vm1389, %v1391, %v1387
        %v1393 = vmul.f32 %v1368, %v1392
        %v1394 = vmin.f32 %v1393, 1.0
        %v1395 = vmax.f32 %v1394, -1.0
        %v1396 = vmul.f32 %v1107, %v1107
        %v1397 = vmin.f32 16.0, %v1396
        %v1398 = vmul.f32 %v1397, 2.1237322e-06
        %v1399 = vadd.f32 %v1398, 0.00028619796
        %v1400 = vmul.f32 %v1397, %v1399
        %v1401 = vadd.f32 %v1400, 0.0036580483
        %v1402 = vmul.f32 %v1397, %v1401
        %v1403 = vadd.f32 %v1402, 0.05243302
        %v1404 = vmul.f32 %v1397, %v1403
        %v1405 = vadd.f32 %v1404, 0.18741608
        %v1406 = vmul.f32 %v1397, %v1405
        %v1407 = vadd.f32 %v1406, 1.1283791
        %v1408 = vmul.f32 %v1107, %v1407
        %v1409 = vmul.f32 %v1397, 3.8918573e-05
        %v1410 = vadd.f32 %v1409, 0.001143296
        %v1411 = vmul.f32 %v1397, %v1410
        %v1412 = vadd.f32 %v1411, 0.014752088
        %v1413 = vmul.f32 %v1397, %v1412
        %v1414 = vadd.f32 %v1413, 0.112945676
        %v1415 = vmul.f32 %v1397, %v1414
        %v1416 = vadd.f32 %v1415, 0.4994258
        %v1417 = vmul.f32 %v1397, %v1416
        %v1418 = vadd.f32 %v1417, 1.0
        %v1419 = vrcp.pop %v1418
        %v1420 = vmul.f32 %v1418, %v1419
        %v1421 = vsub.f32 1.0, %v1420
        %v1422 = vmul.f32 %v1419, %v1421
        %v1423 = vadd.f32 %v1419, %v1422
        %vm1424 = vweird.f32 %v1418
        %vm1425 = vweird.f32 %v1419
        %vm1426 = vmor %vm1424, %vm1425
        %v1427 = vsel %vm1426, %v1419, %v1423
        %v1428 = vand.u32 2147483647, %v1418
        %vm1429 = vcmp.eq.f32.partialorder %v1428, 8.507059e+37
        %v1430 = vand.u32 %v1418, 2147483648
        %v1431 = vor.u32 1.1754944e-38, %v1430
        %v1432 = vsel %vm1429, %v1431, %v1427
        %v1433 = vmul.f32 %v1408, %v1432
        %v1434 = vmin.f32 %v1433, 1.0
        %v1435 = vmax.f32 %v1434, -1.0
        %v1436 = vadd.f32 %v1155, 1.0
        %v1437 = vadd.f32 %v1195, 1.0
        %v1438 = vadd.f32 %v1235, 1.0
        %v1439 = vadd.f32 %v1275, 1.0
        %v1440 = vadd.f32 %v1315, 1.0
        %v1441 = vadd.f32 %v1355, 1.0
        %v1442 = vadd.f32 %v1395, 1.0
        %v1443 = vadd.f32 %v1435, 1.0
        %v1444 = vmul.f32 %v1108, %v1436
        %v1445 = vmul.f32 %v1109, %v1437
        %v1446 = vmul.f32 %v1110, %v1438
        %v1447 = vmul.f32 %v1111, %v1439
        %v1448 = vmul.f32 %v1112, %v1440
        %v1449 = vmul.f32 %v1113, %v1441
        %v1450 = vmul.f32 %v1114, %v1442
        %v1451 = vmul.f32 %v1115, %v1443
        %v1452 = vld [vmem:[%s7] sm:$0xff]
        %v1453 = vld [vmem:[%s7 + $0x8] sm:$0xff]
        %v1454 = vld [vmem:[%s7 + $0x10] sm:$0xff]
        %v1455 = vld [vmem:[%s7 + $0x18] sm:$0xff]
        %v1456 = vld [vmem:[%s8] sm:$0xff]
        %v1457 = vld [vmem:[%s8 + $0x8] sm:$0xff]
        %v1458 = vld [vmem:[%s8 + $0x10] sm:$0xff]
        %v1459 = vld [vmem:[%s8 + $0x18] sm:$0xff]
        %1461 = vset.pattern.permute.xlu0 0
        %1462 = vperm.xlu0 %1461, %v1456
        %v1463 = vpop.permute.xlu0 %1462
        %1466 = vset.pattern.permute.xlu0 0
        %1467 = vperm.xlu0 %1466, %v1457
        %v1468 = vpop.permute.xlu0 %1467
        %1471 = vset.pattern.permute.xlu0 0
        %1472 = vperm.xlu0 %1471, %v1458
        %v1473 = vpop.permute.xlu0 %1472
        %1476 = vset.pattern.permute.xlu0 0
        %1477 = vperm.xlu0 %1476, %v1459
        %v1478 = vpop.permute.xlu0 %1477
        %v1481 = vsel %vm935, %v1452, 0
        %v1484 = vsel %vm935, %v1453, 0
        %v1487 = vsel %vm935, %v1454, 0
        %v1490 = vsel %vm935, %v1455, 0
        %1492 = vmatpush.msra.mxu0 0.0
        %1493 = vmatpush.msra.mxu0 0.0
        %1494 = vmatpush.msra.mxu0 0.0
        %1495 = vmatpush.msra.mxu0 0.0
        %1496 = vmatpush.msra.mxu0 0.0
        %1497 = vmatpush.msra.mxu0 0.0
        %1498 = vmatpush.msra.mxu0 0.0
        %1499 = vmatpush.msra.mxu0 0.0
        %1500 = vmatpush.msra.mxu0 0.0
        %1501 = vmatpush.msra.mxu0 0.0
        %1502 = vmatpush.msra.mxu0 0.0
        %1503 = vmatpush.msra.mxu0 0.0
        %1504 = vmatpush.msra.mxu0 %v1450
        %1505 = vmatpush.msra.mxu0 %v1448
        %1506 = vmatpush.msra.mxu0 %v1446
        %1507 = vmatpush.msra.mxu0 %v1444
        %1508 = vmatmul.f32.gmra.mxu0 %v1481
        %v1509 = vpop.f32.mrf.mxu0
        %v1510 = vadd.f32 %v1463, %v1509
        %1511 = vmatmul.f32.gmra.mxu0 %v1484
        %v1512 = vpop.f32.mrf.mxu0
        %v1513 = vadd.f32 %v1468, %v1512
        %1514 = vmatmul.f32.gmra.mxu0 %v1487
        %v1515 = vpop.f32.mrf.mxu0
        %v1516 = vadd.f32 %v1473, %v1515
        %1517 = vmatmul.f32.gmra.mxu0 %v1490
        %v1518 = vpop.f32.mrf.mxu0
        %v1519 = vadd.f32 %v1478, %v1518
        %1520 = vdwg.mxu0
        %1521 = vmatpush.msra.mxu0 0.0
        %1522 = vmatpush.msra.mxu0 0.0
        %1523 = vmatpush.msra.mxu0 0.0
        %1524 = vmatpush.msra.mxu0 0.0
        %1525 = vmatpush.msra.mxu0 0.0
        %1526 = vmatpush.msra.mxu0 0.0
        %1527 = vmatpush.msra.mxu0 0.0
        %1528 = vmatpush.msra.mxu0 0.0
        %1529 = vmatpush.msra.mxu0 0.0
        %1530 = vmatpush.msra.mxu0 0.0
        %1531 = vmatpush.msra.mxu0 0.0
        %1532 = vmatpush.msra.mxu0 0.0
        %1533 = vmatpush.msra.mxu0 %v1451
        %1534 = vmatpush.msra.mxu0 %v1449
        %1535 = vmatpush.msra.mxu0 %v1447
        %1536 = vmatpush.msra.mxu0 %v1445
        %1537 = vmatmul.f32.gmra.mxu0 %v1481
        %v1538 = vpop.f32.mrf.mxu0
        %v1539 = vadd.f32 %v1463, %v1538
        %1540 = vmatmul.f32.gmra.mxu0 %v1484
        %v1541 = vpop.f32.mrf.mxu0
        %v1542 = vadd.f32 %v1468, %v1541
        %1543 = vmatmul.f32.gmra.mxu0 %v1487
        %v1544 = vpop.f32.mrf.mxu0
        %v1545 = vadd.f32 %v1473, %v1544
        %1546 = vmatmul.f32.gmra.mxu0 %v1490
        %v1547 = vpop.f32.mrf.mxu0
        %v1548 = vadd.f32 %v1478, %v1547
        %1549 = vdwg.mxu0
        %v1550 = vmul.f32 %v1510, 0.70710677
        %v1551 = vmul.f32 %v1539, 0.70710677
        %v1552 = vmul.f32 %v1513, 0.70710677
        %v1553 = vmul.f32 %v1542, 0.70710677
        %v1554 = vmul.f32 %v1516, 0.70710677
        %v1555 = vmul.f32 %v1545, 0.70710677
        %v1556 = vmul.f32 %v1519, 0.70710677
        %v1557 = vmul.f32 %v1548, 0.70710677
        %v1558 = vmul.f32 %v1510, %v1510
        %v1559 = vmin.f32 16.0, %v1558
        %v1560 = vmul.f32 %v1559, 2.1237322e-06
        %v1561 = vadd.f32 %v1560, 0.00028619796
        %v1562 = vmul.f32 %v1559, %v1561
        %v1563 = vadd.f32 %v1562, 0.0036580483
        %v1564 = vmul.f32 %v1559, %v1563
        %v1565 = vadd.f32 %v1564, 0.05243302
        %v1566 = vmul.f32 %v1559, %v1565
        %v1567 = vadd.f32 %v1566, 0.18741608
        %v1568 = vmul.f32 %v1559, %v1567
        %v1569 = vadd.f32 %v1568, 1.1283791
        %v1570 = vmul.f32 %v1510, %v1569
        %v1571 = vmul.f32 %v1559, 3.8918573e-05
        %v1572 = vadd.f32 %v1571, 0.001143296
        %v1573 = vmul.f32 %v1559, %v1572
        %v1574 = vadd.f32 %v1573, 0.014752088
        %v1575 = vmul.f32 %v1559, %v1574
        %v1576 = vadd.f32 %v1575, 0.112945676
        %v1577 = vmul.f32 %v1559, %v1576
        %v1578 = vadd.f32 %v1577, 0.4994258
        %v1579 = vmul.f32 %v1559, %v1578
        %v1580 = vadd.f32 %v1579, 1.0
        %v1581 = vrcp.pop %v1580
        %v1582 = vmul.f32 %v1580, %v1581
        %v1583 = vsub.f32 1.0, %v1582
        %v1584 = vmul.f32 %v1581, %v1583
        %v1585 = vadd.f32 %v1581, %v1584
        %vm1586 = vweird.f32 %v1580
        %vm1587 = vweird.f32 %v1581
        %vm1588 = vmor %vm1586, %vm1587
        %v1589 = vsel %vm1588, %v1581, %v1585
        %v1590 = vand.u32 2147483647, %v1580
        %vm1591 = vcmp.eq.f32.partialorder %v1590, 8.507059e+37
        %v1592 = vand.u32 %v1580, 2147483648
        %v1593 = vor.u32 1.1754944e-38, %v1592
        %v1594 = vsel %vm1591, %v1593, %v1589
        %v1595 = vmul.f32 %v1570, %v1594
        %v1596 = vmin.f32 %v1595, 1.0
        %v1597 = vmax.f32 %v1596, -1.0
        %v1598 = vmul.f32 %v1539, %v1539
        %v1599 = vmin.f32 16.0, %v1598
        %v1600 = vmul.f32 %v1599, 2.1237322e-06
        %v1601 = vadd.f32 %v1600, 0.00028619796
        %v1602 = vmul.f32 %v1599, %v1601
        %v1603 = vadd.f32 %v1602, 0.0036580483
        %v1604 = vmul.f32 %v1599, %v1603
        %v1605 = vadd.f32 %v1604, 0.05243302
        %v1606 = vmul.f32 %v1599, %v1605
        %v1607 = vadd.f32 %v1606, 0.18741608
        %v1608 = vmul.f32 %v1599, %v1607
        %v1609 = vadd.f32 %v1608, 1.1283791
        %v1610 = vmul.f32 %v1539, %v1609
        %v1611 = vmul.f32 %v1599, 3.8918573e-05
        %v1612 = vadd.f32 %v1611, 0.001143296
        %v1613 = vmul.f32 %v1599, %v1612
        %v1614 = vadd.f32 %v1613, 0.014752088
        %v1615 = vmul.f32 %v1599, %v1614
        %v1616 = vadd.f32 %v1615, 0.112945676
        %v1617 = vmul.f32 %v1599, %v1616
        %v1618 = vadd.f32 %v1617, 0.4994258
        %v1619 = vmul.f32 %v1599, %v1618
        %v1620 = vadd.f32 %v1619, 1.0
        %v1621 = vrcp.pop %v1620
        %v1622 = vmul.f32 %v1620, %v1621
        %v1623 = vsub.f32 1.0, %v1622
        %v1624 = vmul.f32 %v1621, %v1623
        %v1625 = vadd.f32 %v1621, %v1624
        %vm1626 = vweird.f32 %v1620
        %vm1627 = vweird.f32 %v1621
        %vm1628 = vmor %vm1626, %vm1627
        %v1629 = vsel %vm1628, %v1621, %v1625
        %v1630 = vand.u32 2147483647, %v1620
        %vm1631 = vcmp.eq.f32.partialorder %v1630, 8.507059e+37
        %v1632 = vand.u32 %v1620, 2147483648
        %v1633 = vor.u32 1.1754944e-38, %v1632
        %v1634 = vsel %vm1631, %v1633, %v1629
        %v1635 = vmul.f32 %v1610, %v1634
        %v1636 = vmin.f32 %v1635, 1.0
        %v1637 = vmax.f32 %v1636, -1.0
        %v1638 = vmul.f32 %v1513, %v1513
        %v1639 = vmin.f32 16.0, %v1638
        %v1640 = vmul.f32 %v1639, 2.1237322e-06
        %v1641 = vadd.f32 %v1640, 0.00028619796
        %v1642 = vmul.f32 %v1639, %v1641
        %v1643 = vadd.f32 %v1642, 0.0036580483
        %v1644 = vmul.f32 %v1639, %v1643
        %v1645 = vadd.f32 %v1644, 0.05243302
        %v1646 = vmul.f32 %v1639, %v1645
        %v1647 = vadd.f32 %v1646, 0.18741608
        %v1648 = vmul.f32 %v1639, %v1647
        %v1649 = vadd.f32 %v1648, 1.1283791
        %v1650 = vmul.f32 %v1513, %v1649
        %v1651 = vmul.f32 %v1639, 3.8918573e-05
        %v1652 = vadd.f32 %v1651, 0.001143296
        %v1653 = vmul.f32 %v1639, %v1652
        %v1654 = vadd.f32 %v1653, 0.014752088
        %v1655 = vmul.f32 %v1639, %v1654
        %v1656 = vadd.f32 %v1655, 0.112945676
        %v1657 = vmul.f32 %v1639, %v1656
        %v1658 = vadd.f32 %v1657, 0.4994258
        %v1659 = vmul.f32 %v1639, %v1658
        %v1660 = vadd.f32 %v1659, 1.0
        %v1661 = vrcp.pop %v1660
        %v1662 = vmul.f32 %v1660, %v1661
        %v1663 = vsub.f32 1.0, %v1662
        %v1664 = vmul.f32 %v1661, %v1663
        %v1665 = vadd.f32 %v1661, %v1664
        %vm1666 = vweird.f32 %v1660
        %vm1667 = vweird.f32 %v1661
        %vm1668 = vmor %vm1666, %vm1667
        %v1669 = vsel %vm1668, %v1661, %v1665
        %v1670 = vand.u32 2147483647, %v1660
        %vm1671 = vcmp.eq.f32.partialorder %v1670, 8.507059e+37
        %v1672 = vand.u32 %v1660, 2147483648
        %v1673 = vor.u32 1.1754944e-38, %v1672
        %v1674 = vsel %vm1671, %v1673, %v1669
        %v1675 = vmul.f32 %v1650, %v1674
        %v1676 = vmin.f32 %v1675, 1.0
        %v1677 = vmax.f32 %v1676, -1.0
        %v1678 = vmul.f32 %v1542, %v1542
        %v1679 = vmin.f32 16.0, %v1678
        %v1680 = vmul.f32 %v1679, 2.1237322e-06
        %v1681 = vadd.f32 %v1680, 0.00028619796
        %v1682 = vmul.f32 %v1679, %v1681
        %v1683 = vadd.f32 %v1682, 0.0036580483
        %v1684 = vmul.f32 %v1679, %v1683
        %v1685 = vadd.f32 %v1684, 0.05243302
        %v1686 = vmul.f32 %v1679, %v1685
        %v1687 = vadd.f32 %v1686, 0.18741608
        %v1688 = vmul.f32 %v1679, %v1687
        %v1689 = vadd.f32 %v1688, 1.1283791
        %v1690 = vmul.f32 %v1542, %v1689
        %v1691 = vmul.f32 %v1679, 3.8918573e-05
        %v1692 = vadd.f32 %v1691, 0.001143296
        %v1693 = vmul.f32 %v1679, %v1692
        %v1694 = vadd.f32 %v1693, 0.014752088
        %v1695 = vmul.f32 %v1679, %v1694
        %v1696 = vadd.f32 %v1695, 0.112945676
        %v1697 = vmul.f32 %v1679, %v1696
        %v1698 = vadd.f32 %v1697, 0.4994258
        %v1699 = vmul.f32 %v1679, %v1698
        %v1700 = vadd.f32 %v1699, 1.0
        %v1701 = vrcp.pop %v1700
        %v1702 = vmul.f32 %v1700, %v1701
        %v1703 = vsub.f32 1.0, %v1702
        %v1704 = vmul.f32 %v1701, %v1703
        %v1705 = vadd.f32 %v1701, %v1704
        %vm1706 = vweird.f32 %v1700
        %vm1707 = vweird.f32 %v1701
        %vm1708 = vmor %vm1706, %vm1707
        %v1709 = vsel %vm1708, %v1701, %v1705
        %v1710 = vand.u32 2147483647, %v1700
        %vm1711 = vcmp.eq.f32.partialorder %v1710, 8.507059e+37
        %v1712 = vand.u32 %v1700, 2147483648
        %v1713 = vor.u32 1.1754944e-38, %v1712
        %v1714 = vsel %vm1711, %v1713, %v1709
        %v1715 = vmul.f32 %v1690, %v1714
        %v1716 = vmin.f32 %v1715, 1.0
        %v1717 = vmax.f32 %v1716, -1.0
        %v1718 = vmul.f32 %v1516, %v1516
        %v1719 = vmin.f32 16.0, %v1718
        %v1720 = vmul.f32 %v1719, 2.1237322e-06
        %v1721 = vadd.f32 %v1720, 0.00028619796
        %v1722 = vmul.f32 %v1719, %v1721
        %v1723 = vadd.f32 %v1722, 0.0036580483
        %v1724 = vmul.f32 %v1719, %v1723
        %v1725 = vadd.f32 %v1724, 0.05243302
        %v1726 = vmul.f32 %v1719, %v1725
        %v1727 = vadd.f32 %v1726, 0.18741608
        %v1728 = vmul.f32 %v1719, %v1727
        %v1729 = vadd.f32 %v1728, 1.1283791
        %v1730 = vmul.f32 %v1516, %v1729
        %v1731 = vmul.f32 %v1719, 3.8918573e-05
        %v1732 = vadd.f32 %v1731, 0.001143296
        %v1733 = vmul.f32 %v1719, %v1732
        %v1734 = vadd.f32 %v1733, 0.014752088
        %v1735 = vmul.f32 %v1719, %v1734
        %v1736 = vadd.f32 %v1735, 0.112945676
        %v1737 = vmul.f32 %v1719, %v1736
        %v1738 = vadd.f32 %v1737, 0.4994258
        %v1739 = vmul.f32 %v1719, %v1738
        %v1740 = vadd.f32 %v1739, 1.0
        %v1741 = vrcp.pop %v1740
        %v1742 = vmul.f32 %v1740, %v1741
        %v1743 = vsub.f32 1.0, %v1742
        %v1744 = vmul.f32 %v1741, %v1743
        %v1745 = vadd.f32 %v1741, %v1744
        %vm1746 = vweird.f32 %v1740
        %vm1747 = vweird.f32 %v1741
        %vm1748 = vmor %vm1746, %vm1747
        %v1749 = vsel %vm1748, %v1741, %v1745
        %v1750 = vand.u32 2147483647, %v1740
        %vm1751 = vcmp.eq.f32.partialorder %v1750, 8.507059e+37
        %v1752 = vand.u32 %v1740, 2147483648
        %v1753 = vor.u32 1.1754944e-38, %v1752
        %v1754 = vsel %vm1751, %v1753, %v1749
        %v1755 = vmul.f32 %v1730, %v1754
        %v1756 = vmin.f32 %v1755, 1.0
        %v1757 = vmax.f32 %v1756, -1.0
        %v1758 = vmul.f32 %v1545, %v1545
        %v1759 = vmin.f32 16.0, %v1758
        %v1760 = vmul.f32 %v1759, 2.1237322e-06
        %v1761 = vadd.f32 %v1760, 0.00028619796
        %v1762 = vmul.f32 %v1759, %v1761
        %v1763 = vadd.f32 %v1762, 0.0036580483
        %v1764 = vmul.f32 %v1759, %v1763
        %v1765 = vadd.f32 %v1764, 0.05243302
        %v1766 = vmul.f32 %v1759, %v1765
        %v1767 = vadd.f32 %v1766, 0.18741608
        %v1768 = vmul.f32 %v1759, %v1767
        %v1769 = vadd.f32 %v1768, 1.1283791
        %v1770 = vmul.f32 %v1545, %v1769
        %v1771 = vmul.f32 %v1759, 3.8918573e-05
        %v1772 = vadd.f32 %v1771, 0.001143296
        %v1773 = vmul.f32 %v1759, %v1772
        %v1774 = vadd.f32 %v1773, 0.014752088
        %v1775 = vmul.f32 %v1759, %v1774
        %v1776 = vadd.f32 %v1775, 0.112945676
        %v1777 = vmul.f32 %v1759, %v1776
        %v1778 = vadd.f32 %v1777, 0.4994258
        %v1779 = vmul.f32 %v1759, %v1778
        %v1780 = vadd.f32 %v1779, 1.0
        %v1781 = vrcp.pop %v1780
        %v1782 = vmul.f32 %v1780, %v1781
        %v1783 = vsub.f32 1.0, %v1782
        %v1784 = vmul.f32 %v1781, %v1783
        %v1785 = vadd.f32 %v1781, %v1784
        %vm1786 = vweird.f32 %v1780
        %vm1787 = vweird.f32 %v1781
        %vm1788 = vmor %vm1786, %vm1787
        %v1789 = vsel %vm1788, %v1781, %v1785
        %v1790 = vand.u32 2147483647, %v1780
        %vm1791 = vcmp.eq.f32.partialorder %v1790, 8.507059e+37
        %v1792 = vand.u32 %v1780, 2147483648
        %v1793 = vor.u32 1.1754944e-38, %v1792
        %v1794 = vsel %vm1791, %v1793, %v1789
        %v1795 = vmul.f32 %v1770, %v1794
        %v1796 = vmin.f32 %v1795, 1.0
        %v1797 = vmax.f32 %v1796, -1.0
        %v1798 = vmul.f32 %v1519, %v1519
        %v1799 = vmin.f32 16.0, %v1798
        %v1800 = vmul.f32 %v1799, 2.1237322e-06
        %v1801 = vadd.f32 %v1800, 0.00028619796
        %v1802 = vmul.f32 %v1799, %v1801
        %v1803 = vadd.f32 %v1802, 0.0036580483
        %v1804 = vmul.f32 %v1799, %v1803
        %v1805 = vadd.f32 %v1804, 0.05243302
        %v1806 = vmul.f32 %v1799, %v1805
        %v1807 = vadd.f32 %v1806, 0.18741608
        %v1808 = vmul.f32 %v1799, %v1807
        %v1809 = vadd.f32 %v1808, 1.1283791
        %v1810 = vmul.f32 %v1519, %v1809
        %v1811 = vmul.f32 %v1799, 3.8918573e-05
        %v1812 = vadd.f32 %v1811, 0.001143296
        %v1813 = vmul.f32 %v1799, %v1812
        %v1814 = vadd.f32 %v1813, 0.014752088
        %v1815 = vmul.f32 %v1799, %v1814
        %v1816 = vadd.f32 %v1815, 0.112945676
        %v1817 = vmul.f32 %v1799, %v1816
        %v1818 = vadd.f32 %v1817, 0.4994258
        %v1819 = vmul.f32 %v1799, %v1818
        %v1820 = vadd.f32 %v1819, 1.0
        %v1821 = vrcp.pop %v1820
        %v1822 = vmul.f32 %v1820, %v1821
        %v1823 = vsub.f32 1.0, %v1822
        %v1824 = vmul.f32 %v1821, %v1823
        %v1825 = vadd.f32 %v1821, %v1824
        %vm1826 = vweird.f32 %v1820
        %vm1827 = vweird.f32 %v1821
        %vm1828 = vmor %vm1826, %vm1827
        %v1829 = vsel %vm1828, %v1821, %v1825
        %v1830 = vand.u32 2147483647, %v1820
        %vm1831 = vcmp.eq.f32.partialorder %v1830, 8.507059e+37
        %v1832 = vand.u32 %v1820, 2147483648
        %v1833 = vor.u32 1.1754944e-38, %v1832
        %v1834 = vsel %vm1831, %v1833, %v1829
        %v1835 = vmul.f32 %v1810, %v1834
        %v1836 = vmin.f32 %v1835, 1.0
        %v1837 = vmax.f32 %v1836, -1.0
        %v1838 = vmul.f32 %v1548, %v1548
        %v1839 = vmin.f32 16.0, %v1838
        %v1840 = vmul.f32 %v1839, 2.1237322e-06
        %v1841 = vadd.f32 %v1840, 0.00028619796
        %v1842 = vmul.f32 %v1839, %v1841
        %v1843 = vadd.f32 %v1842, 0.0036580483
        %v1844 = vmul.f32 %v1839, %v1843
        %v1845 = vadd.f32 %v1844, 0.05243302
        %v1846 = vmul.f32 %v1839, %v1845
        %v1847 = vadd.f32 %v1846, 0.18741608
        %v1848 = vmul.f32 %v1839, %v1847
        %v1849 = vadd.f32 %v1848, 1.1283791
        %v1850 = vmul.f32 %v1548, %v1849
        %v1851 = vmul.f32 %v1839, 3.8918573e-05
        %v1852 = vadd.f32 %v1851, 0.001143296
        %v1853 = vmul.f32 %v1839, %v1852
        %v1854 = vadd.f32 %v1853, 0.014752088
        %v1855 = vmul.f32 %v1839, %v1854
        %v1856 = vadd.f32 %v1855, 0.112945676
        %v1857 = vmul.f32 %v1839, %v1856
        %v1858 = vadd.f32 %v1857, 0.4994258
        %v1859 = vmul.f32 %v1839, %v1858
        %v1860 = vadd.f32 %v1859, 1.0
        %v1861 = vrcp.pop %v1860
        %v1862 = vmul.f32 %v1860, %v1861
        %v1863 = vsub.f32 1.0, %v1862
        %v1864 = vmul.f32 %v1861, %v1863
        %v1865 = vadd.f32 %v1861, %v1864
        %vm1866 = vweird.f32 %v1860
        %vm1867 = vweird.f32 %v1861
        %vm1868 = vmor %vm1866, %vm1867
        %v1869 = vsel %vm1868, %v1861, %v1865
        %v1870 = vand.u32 2147483647, %v1860
        %vm1871 = vcmp.eq.f32.partialorder %v1870, 8.507059e+37
        %v1872 = vand.u32 %v1860, 2147483648
        %v1873 = vor.u32 1.1754944e-38, %v1872
        %v1874 = vsel %vm1871, %v1873, %v1869
        %v1875 = vmul.f32 %v1850, %v1874
        %v1876 = vmin.f32 %v1875, 1.0
        %v1877 = vmax.f32 %v1876, -1.0
        %v1878 = vadd.f32 %v1597, 1.0
        %v1879 = vadd.f32 %v1637, 1.0
        %v1880 = vadd.f32 %v1677, 1.0
        %v1881 = vadd.f32 %v1717, 1.0
        %v1882 = vadd.f32 %v1757, 1.0
        %v1883 = vadd.f32 %v1797, 1.0
        %v1884 = vadd.f32 %v1837, 1.0
        %v1885 = vadd.f32 %v1877, 1.0
        %v1886 = vmul.f32 %v1550, %v1878
        %v1887 = vmul.f32 %v1551, %v1879
        %v1888 = vmul.f32 %v1552, %v1880
        %v1889 = vmul.f32 %v1553, %v1881
        %v1890 = vmul.f32 %v1554, %v1882
        %v1891 = vmul.f32 %v1555, %v1883
        %v1892 = vmul.f32 %v1556, %v1884
        %v1893 = vmul.f32 %v1557, %v1885
        %v1894 = vld [vmem:[%s9] sm:$0xff]
        %v1895 = vld [vmem:[%s9 + $0x8] sm:$0xff]
        %v1896 = vld [vmem:[%s9 + $0x10] sm:$0xff]
        %v1897 = vld [vmem:[%s9 + $0x18] sm:$0xff]
        %v1898 = vld [vmem:[%s10] sm:$0xff]
        %v1899 = vld [vmem:[%s10 + $0x8] sm:$0xff]
        %v1900 = vld [vmem:[%s10 + $0x10] sm:$0xff]
        %v1901 = vld [vmem:[%s10 + $0x18] sm:$0xff]
        %1903 = vset.pattern.permute.xlu0 0
        %1904 = vperm.xlu0 %1903, %v1898
        %v1905 = vpop.permute.xlu0 %1904
        %1908 = vset.pattern.permute.xlu0 0
        %1909 = vperm.xlu0 %1908, %v1899
        %v1910 = vpop.permute.xlu0 %1909
        %1913 = vset.pattern.permute.xlu0 0
        %1914 = vperm.xlu0 %1913, %v1900
        %v1915 = vpop.permute.xlu0 %1914
        %1918 = vset.pattern.permute.xlu0 0
        %1919 = vperm.xlu0 %1918, %v1901
        %v1920 = vpop.permute.xlu0 %1919
        %v1923 = vsel %vm935, %v1894, 0
        %v1926 = vsel %vm935, %v1895, 0
        %v1929 = vsel %vm935, %v1896, 0
        %v1932 = vsel %vm935, %v1897, 0
        %1934 = vmatpush.msra.mxu0 0.0
        %1935 = vmatpush.msra.mxu0 0.0
        %1936 = vmatpush.msra.mxu0 0.0
        %1937 = vmatpush.msra.mxu0 0.0
        %1938 = vmatpush.msra.mxu0 0.0
        %1939 = vmatpush.msra.mxu0 0.0
        %1940 = vmatpush.msra.mxu0 0.0
        %1941 = vmatpush.msra.mxu0 0.0
        %1942 = vmatpush.msra.mxu0 0.0
        %1943 = vmatpush.msra.mxu0 0.0
        %1944 = vmatpush.msra.mxu0 0.0
        %1945 = vmatpush.msra.mxu0 0.0
        %1946 = vmatpush.msra.mxu0 %v1892
        %1947 = vmatpush.msra.mxu0 %v1890
        %1948 = vmatpush.msra.mxu0 %v1888
        %1949 = vmatpush.msra.mxu0 %v1886
        %1950 = vmatmul.f32.gmra.mxu0 %v1923
        %v1951 = vpop.f32.mrf.mxu0
        %v1952 = vadd.f32 %v1905, %v1951
        %1953 = vmatmul.f32.gmra.mxu0 %v1926
        %v1954 = vpop.f32.mrf.mxu0
        %v1955 = vadd.f32 %v1910, %v1954
        %1956 = vmatmul.f32.gmra.mxu0 %v1929
        %v1957 = vpop.f32.mrf.mxu0
        %v1958 = vadd.f32 %v1915, %v1957
        %1959 = vmatmul.f32.gmra.mxu0 %v1932
        %v1960 = vpop.f32.mrf.mxu0
        %v1961 = vadd.f32 %v1920, %v1960
        %1962 = vdwg.mxu0
        %1963 = vmatpush.msra.mxu0 0.0
        %1964 = vmatpush.msra.mxu0 0.0
        %1965 = vmatpush.msra.mxu0 0.0
        %1966 = vmatpush.msra.mxu0 0.0
        %1967 = vmatpush.msra.mxu0 0.0
        %1968 = vmatpush.msra.mxu0 0.0
        %1969 = vmatpush.msra.mxu0 0.0
        %1970 = vmatpush.msra.mxu0 0.0
        %1971 = vmatpush.msra.mxu0 0.0
        %1972 = vmatpush.msra.mxu0 0.0
        %1973 = vmatpush.msra.mxu0 0.0
        %1974 = vmatpush.msra.mxu0 0.0
        %1975 = vmatpush.msra.mxu0 %v1893
        %1976 = vmatpush.msra.mxu0 %v1891
        %1977 = vmatpush.msra.mxu0 %v1889
        %1978 = vmatpush.msra.mxu0 %v1887
        %1979 = vmatmul.f32.gmra.mxu0 %v1923
        %v1980 = vpop.f32.mrf.mxu0
        %v1981 = vadd.f32 %v1905, %v1980
        %1982 = vmatmul.f32.gmra.mxu0 %v1926
        %v1983 = vpop.f32.mrf.mxu0
        %v1984 = vadd.f32 %v1910, %v1983
        %1985 = vmatmul.f32.gmra.mxu0 %v1929
        %v1986 = vpop.f32.mrf.mxu0
        %v1987 = vadd.f32 %v1915, %v1986
        %1988 = vmatmul.f32.gmra.mxu0 %v1932
        %v1989 = vpop.f32.mrf.mxu0
        %v1990 = vadd.f32 %v1920, %v1989
        %1991 = vdwg.mxu0
        %v1992 = vmul.f32 %v1952, 0.70710677
        %v1993 = vmul.f32 %v1981, 0.70710677
        %v1994 = vmul.f32 %v1955, 0.70710677
        %v1995 = vmul.f32 %v1984, 0.70710677
        %v1996 = vmul.f32 %v1958, 0.70710677
        %v1997 = vmul.f32 %v1987, 0.70710677
        %v1998 = vmul.f32 %v1961, 0.70710677
        %v1999 = vmul.f32 %v1990, 0.70710677
        %v2000 = vmul.f32 %v1952, %v1952
        %v2001 = vmin.f32 16.0, %v2000
        %v2002 = vmul.f32 %v2001, 2.1237322e-06
        %v2003 = vadd.f32 %v2002, 0.00028619796
        %v2004 = vmul.f32 %v2001, %v2003
        %v2005 = vadd.f32 %v2004, 0.0036580483
        %v2006 = vmul.f32 %v2001, %v2005
        %v2007 = vadd.f32 %v2006, 0.05243302
        %v2008 = vmul.f32 %v2001, %v2007
        %v2009 = vadd.f32 %v2008, 0.18741608
        %v2010 = vmul.f32 %v2001, %v2009
        %v2011 = vadd.f32 %v2010, 1.1283791
        %v2012 = vmul.f32 %v1952, %v2011
        %v2013 = vmul.f32 %v2001, 3.8918573e-05
        %v2014 = vadd.f32 %v2013, 0.001143296
        %v2015 = vmul.f32 %v2001, %v2014
        %v2016 = vadd.f32 %v2015, 0.014752088
        %v2017 = vmul.f32 %v2001, %v2016
        %v2018 = vadd.f32 %v2017, 0.112945676
        %v2019 = vmul.f32 %v2001, %v2018
        %v2020 = vadd.f32 %v2019, 0.4994258
        %v2021 = vmul.f32 %v2001, %v2020
        %v2022 = vadd.f32 %v2021, 1.0
        %v2023 = vrcp.pop %v2022
        %v2024 = vmul.f32 %v2022, %v2023
        %v2025 = vsub.f32 1.0, %v2024
        %v2026 = vmul.f32 %v2023, %v2025
        %v2027 = vadd.f32 %v2023, %v2026
        %vm2028 = vweird.f32 %v2022
        %vm2029 = vweird.f32 %v2023
        %vm2030 = vmor %vm2028, %vm2029
        %v2031 = vsel %vm2030, %v2023, %v2027
        %v2032 = vand.u32 2147483647, %v2022
        %vm2033 = vcmp.eq.f32.partialorder %v2032, 8.507059e+37
        %v2034 = vand.u32 %v2022, 2147483648
        %v2035 = vor.u32 1.1754944e-38, %v2034
        %v2036 = vsel %vm2033, %v2035, %v2031
        %v2037 = vmul.f32 %v2012, %v2036
        %v2038 = vmin.f32 %v2037, 1.0
        %v2039 = vmax.f32 %v2038, -1.0
        %v2040 = vmul.f32 %v1981, %v1981
        %v2041 = vmin.f32 16.0, %v2040
        %v2042 = vmul.f32 %v2041, 2.1237322e-06
        %v2043 = vadd.f32 %v2042, 0.00028619796
        %v2044 = vmul.f32 %v2041, %v2043
        %v2045 = vadd.f32 %v2044, 0.0036580483
        %v2046 = vmul.f32 %v2041, %v2045
        %v2047 = vadd.f32 %v2046, 0.05243302
        %v2048 = vmul.f32 %v2041, %v2047
        %v2049 = vadd.f32 %v2048, 0.18741608
        %v2050 = vmul.f32 %v2041, %v2049
        %v2051 = vadd.f32 %v2050, 1.1283791
        %v2052 = vmul.f32 %v1981, %v2051
        %v2053 = vmul.f32 %v2041, 3.8918573e-05
        %v2054 = vadd.f32 %v2053, 0.001143296
        %v2055 = vmul.f32 %v2041, %v2054
        %v2056 = vadd.f32 %v2055, 0.014752088
        %v2057 = vmul.f32 %v2041, %v2056
        %v2058 = vadd.f32 %v2057, 0.112945676
        %v2059 = vmul.f32 %v2041, %v2058
        %v2060 = vadd.f32 %v2059, 0.4994258
        %v2061 = vmul.f32 %v2041, %v2060
        %v2062 = vadd.f32 %v2061, 1.0
        %v2063 = vrcp.pop %v2062
        %v2064 = vmul.f32 %v2062, %v2063
        %v2065 = vsub.f32 1.0, %v2064
        %v2066 = vmul.f32 %v2063, %v2065
        %v2067 = vadd.f32 %v2063, %v2066
        %vm2068 = vweird.f32 %v2062
        %vm2069 = vweird.f32 %v2063
        %vm2070 = vmor %vm2068, %vm2069
        %v2071 = vsel %vm2070, %v2063, %v2067
        %v2072 = vand.u32 2147483647, %v2062
        %vm2073 = vcmp.eq.f32.partialorder %v2072, 8.507059e+37
        %v2074 = vand.u32 %v2062, 2147483648
        %v2075 = vor.u32 1.1754944e-38, %v2074
        %v2076 = vsel %vm2073, %v2075, %v2071
        %v2077 = vmul.f32 %v2052, %v2076
        %v2078 = vmin.f32 %v2077, 1.0
        %v2079 = vmax.f32 %v2078, -1.0
        %v2080 = vmul.f32 %v1955, %v1955
        %v2081 = vmin.f32 16.0, %v2080
        %v2082 = vmul.f32 %v2081, 2.1237322e-06
        %v2083 = vadd.f32 %v2082, 0.00028619796
        %v2084 = vmul.f32 %v2081, %v2083
        %v2085 = vadd.f32 %v2084, 0.0036580483
        %v2086 = vmul.f32 %v2081, %v2085
        %v2087 = vadd.f32 %v2086, 0.05243302
        %v2088 = vmul.f32 %v2081, %v2087
        %v2089 = vadd.f32 %v2088, 0.18741608
        %v2090 = vmul.f32 %v2081, %v2089
        %v2091 = vadd.f32 %v2090, 1.1283791
        %v2092 = vmul.f32 %v1955, %v2091
        %v2093 = vmul.f32 %v2081, 3.8918573e-05
        %v2094 = vadd.f32 %v2093, 0.001143296
        %v2095 = vmul.f32 %v2081, %v2094
        %v2096 = vadd.f32 %v2095, 0.014752088
        %v2097 = vmul.f32 %v2081, %v2096
        %v2098 = vadd.f32 %v2097, 0.112945676
        %v2099 = vmul.f32 %v2081, %v2098
        %v2100 = vadd.f32 %v2099, 0.4994258
        %v2101 = vmul.f32 %v2081, %v2100
        %v2102 = vadd.f32 %v2101, 1.0
        %v2103 = vrcp.pop %v2102
        %v2104 = vmul.f32 %v2102, %v2103
        %v2105 = vsub.f32 1.0, %v2104
        %v2106 = vmul.f32 %v2103, %v2105
        %v2107 = vadd.f32 %v2103, %v2106
        %vm2108 = vweird.f32 %v2102
        %vm2109 = vweird.f32 %v2103
        %vm2110 = vmor %vm2108, %vm2109
        %v2111 = vsel %vm2110, %v2103, %v2107
        %v2112 = vand.u32 2147483647, %v2102
        %vm2113 = vcmp.eq.f32.partialorder %v2112, 8.507059e+37
        %v2114 = vand.u32 %v2102, 2147483648
        %v2115 = vor.u32 1.1754944e-38, %v2114
        %v2116 = vsel %vm2113, %v2115, %v2111
        %v2117 = vmul.f32 %v2092, %v2116
        %v2118 = vmin.f32 %v2117, 1.0
        %v2119 = vmax.f32 %v2118, -1.0
        %v2120 = vmul.f32 %v1984, %v1984
        %v2121 = vmin.f32 16.0, %v2120
        %v2122 = vmul.f32 %v2121, 2.1237322e-06
        %v2123 = vadd.f32 %v2122, 0.00028619796
        %v2124 = vmul.f32 %v2121, %v2123
        %v2125 = vadd.f32 %v2124, 0.0036580483
        %v2126 = vmul.f32 %v2121, %v2125
        %v2127 = vadd.f32 %v2126, 0.05243302
        %v2128 = vmul.f32 %v2121, %v2127
        %v2129 = vadd.f32 %v2128, 0.18741608
        %v2130 = vmul.f32 %v2121, %v2129
        %v2131 = vadd.f32 %v2130, 1.1283791
        %v2132 = vmul.f32 %v1984, %v2131
        %v2133 = vmul.f32 %v2121, 3.8918573e-05
        %v2134 = vadd.f32 %v2133, 0.001143296
        %v2135 = vmul.f32 %v2121, %v2134
        %v2136 = vadd.f32 %v2135, 0.014752088
        %v2137 = vmul.f32 %v2121, %v2136
        %v2138 = vadd.f32 %v2137, 0.112945676
        %v2139 = vmul.f32 %v2121, %v2138
        %v2140 = vadd.f32 %v2139, 0.4994258
        %v2141 = vmul.f32 %v2121, %v2140
        %v2142 = vadd.f32 %v2141, 1.0
        %v2143 = vrcp.pop %v2142
        %v2144 = vmul.f32 %v2142, %v2143
        %v2145 = vsub.f32 1.0, %v2144
        %v2146 = vmul.f32 %v2143, %v2145
        %v2147 = vadd.f32 %v2143, %v2146
        %vm2148 = vweird.f32 %v2142
        %vm2149 = vweird.f32 %v2143
        %vm2150 = vmor %vm2148, %vm2149
        %v2151 = vsel %vm2150, %v2143, %v2147
        %v2152 = vand.u32 2147483647, %v2142
        %vm2153 = vcmp.eq.f32.partialorder %v2152, 8.507059e+37
        %v2154 = vand.u32 %v2142, 2147483648
        %v2155 = vor.u32 1.1754944e-38, %v2154
        %v2156 = vsel %vm2153, %v2155, %v2151
        %v2157 = vmul.f32 %v2132, %v2156
        %v2158 = vmin.f32 %v2157, 1.0
        %v2159 = vmax.f32 %v2158, -1.0
        %v2160 = vmul.f32 %v1958, %v1958
        %v2161 = vmin.f32 16.0, %v2160
        %v2162 = vmul.f32 %v2161, 2.1237322e-06
        %v2163 = vadd.f32 %v2162, 0.00028619796
        %v2164 = vmul.f32 %v2161, %v2163
        %v2165 = vadd.f32 %v2164, 0.0036580483
        %v2166 = vmul.f32 %v2161, %v2165
        %v2167 = vadd.f32 %v2166, 0.05243302
        %v2168 = vmul.f32 %v2161, %v2167
        %v2169 = vadd.f32 %v2168, 0.18741608
        %v2170 = vmul.f32 %v2161, %v2169
        %v2171 = vadd.f32 %v2170, 1.1283791
        %v2172 = vmul.f32 %v1958, %v2171
        %v2173 = vmul.f32 %v2161, 3.8918573e-05
        %v2174 = vadd.f32 %v2173, 0.001143296
        %v2175 = vmul.f32 %v2161, %v2174
        %v2176 = vadd.f32 %v2175, 0.014752088
        %v2177 = vmul.f32 %v2161, %v2176
        %v2178 = vadd.f32 %v2177, 0.112945676
        %v2179 = vmul.f32 %v2161, %v2178
        %v2180 = vadd.f32 %v2179, 0.4994258
        %v2181 = vmul.f32 %v2161, %v2180
        %v2182 = vadd.f32 %v2181, 1.0
        %v2183 = vrcp.pop %v2182
        %v2184 = vmul.f32 %v2182, %v2183
        %v2185 = vsub.f32 1.0, %v2184
        %v2186 = vmul.f32 %v2183, %v2185
        %v2187 = vadd.f32 %v2183, %v2186
        %vm2188 = vweird.f32 %v2182
        %vm2189 = vweird.f32 %v2183
        %vm2190 = vmor %vm2188, %vm2189
        %v2191 = vsel %vm2190, %v2183, %v2187
        %v2192 = vand.u32 2147483647, %v2182
        %vm2193 = vcmp.eq.f32.partialorder %v2192, 8.507059e+37
        %v2194 = vand.u32 %v2182, 2147483648
        %v2195 = vor.u32 1.1754944e-38, %v2194
        %v2196 = vsel %vm2193, %v2195, %v2191
        %v2197 = vmul.f32 %v2172, %v2196
        %v2198 = vmin.f32 %v2197, 1.0
        %v2199 = vmax.f32 %v2198, -1.0
        %v2200 = vmul.f32 %v1987, %v1987
        %v2201 = vmin.f32 16.0, %v2200
        %v2202 = vmul.f32 %v2201, 2.1237322e-06
        %v2203 = vadd.f32 %v2202, 0.00028619796
        %v2204 = vmul.f32 %v2201, %v2203
        %v2205 = vadd.f32 %v2204, 0.0036580483
        %v2206 = vmul.f32 %v2201, %v2205
        %v2207 = vadd.f32 %v2206, 0.05243302
        %v2208 = vmul.f32 %v2201, %v2207
        %v2209 = vadd.f32 %v2208, 0.18741608
        %v2210 = vmul.f32 %v2201, %v2209
        %v2211 = vadd.f32 %v2210, 1.1283791
        %v2212 = vmul.f32 %v1987, %v2211
        %v2213 = vmul.f32 %v2201, 3.8918573e-05
        %v2214 = vadd.f32 %v2213, 0.001143296
        %v2215 = vmul.f32 %v2201, %v2214
        %v2216 = vadd.f32 %v2215, 0.014752088
        %v2217 = vmul.f32 %v2201, %v2216
        %v2218 = vadd.f32 %v2217, 0.112945676
        %v2219 = vmul.f32 %v2201, %v2218
        %v2220 = vadd.f32 %v2219, 0.4994258
        %v2221 = vmul.f32 %v2201, %v2220
        %v2222 = vadd.f32 %v2221, 1.0
        %v2223 = vrcp.pop %v2222
        %v2224 = vmul.f32 %v2222, %v2223
        %v2225 = vsub.f32 1.0, %v2224
        %v2226 = vmul.f32 %v2223, %v2225
        %v2227 = vadd.f32 %v2223, %v2226
        %vm2228 = vweird.f32 %v2222
        %vm2229 = vweird.f32 %v2223
        %vm2230 = vmor %vm2228, %vm2229
        %v2231 = vsel %vm2230, %v2223, %v2227
        %v2232 = vand.u32 2147483647, %v2222
        %vm2233 = vcmp.eq.f32.partialorder %v2232, 8.507059e+37
        %v2234 = vand.u32 %v2222, 2147483648
        %v2235 = vor.u32 1.1754944e-38, %v2234
        %v2236 = vsel %vm2233, %v2235, %v2231
        %v2237 = vmul.f32 %v2212, %v2236
        %v2238 = vmin.f32 %v2237, 1.0
        %v2239 = vmax.f32 %v2238, -1.0
        %v2240 = vmul.f32 %v1961, %v1961
        %v2241 = vmin.f32 16.0, %v2240
        %v2242 = vmul.f32 %v2241, 2.1237322e-06
        %v2243 = vadd.f32 %v2242, 0.00028619796
        %v2244 = vmul.f32 %v2241, %v2243
        %v2245 = vadd.f32 %v2244, 0.0036580483
        %v2246 = vmul.f32 %v2241, %v2245
        %v2247 = vadd.f32 %v2246, 0.05243302
        %v2248 = vmul.f32 %v2241, %v2247
        %v2249 = vadd.f32 %v2248, 0.18741608
        %v2250 = vmul.f32 %v2241, %v2249
        %v2251 = vadd.f32 %v2250, 1.1283791
        %v2252 = vmul.f32 %v1961, %v2251
        %v2253 = vmul.f32 %v2241, 3.8918573e-05
        %v2254 = vadd.f32 %v2253, 0.001143296
        %v2255 = vmul.f32 %v2241, %v2254
        %v2256 = vadd.f32 %v2255, 0.014752088
        %v2257 = vmul.f32 %v2241, %v2256
        %v2258 = vadd.f32 %v2257, 0.112945676
        %v2259 = vmul.f32 %v2241, %v2258
        %v2260 = vadd.f32 %v2259, 0.4994258
        %v2261 = vmul.f32 %v2241, %v2260
        %v2262 = vadd.f32 %v2261, 1.0
        %v2263 = vrcp.pop %v2262
        %v2264 = vmul.f32 %v2262, %v2263
        %v2265 = vsub.f32 1.0, %v2264
        %v2266 = vmul.f32 %v2263, %v2265
        %v2267 = vadd.f32 %v2263, %v2266
        %vm2268 = vweird.f32 %v2262
        %vm2269 = vweird.f32 %v2263
        %vm2270 = vmor %vm2268, %vm2269
        %v2271 = vsel %vm2270, %v2263, %v2267
        %v2272 = vand.u32 2147483647, %v2262
        %vm2273 = vcmp.eq.f32.partialorder %v2272, 8.507059e+37
        %v2274 = vand.u32 %v2262, 2147483648
        %v2275 = vor.u32 1.1754944e-38, %v2274
        %v2276 = vsel %vm2273, %v2275, %v2271
        %v2277 = vmul.f32 %v2252, %v2276
        %v2278 = vmin.f32 %v2277, 1.0
        %v2279 = vmax.f32 %v2278, -1.0
        %v2280 = vmul.f32 %v1990, %v1990
        %v2281 = vmin.f32 16.0, %v2280
        %v2282 = vmul.f32 %v2281, 2.1237322e-06
        %v2283 = vadd.f32 %v2282, 0.00028619796
        %v2284 = vmul.f32 %v2281, %v2283
        %v2285 = vadd.f32 %v2284, 0.0036580483
        %v2286 = vmul.f32 %v2281, %v2285
        %v2287 = vadd.f32 %v2286, 0.05243302
        %v2288 = vmul.f32 %v2281, %v2287
        %v2289 = vadd.f32 %v2288, 0.18741608
        %v2290 = vmul.f32 %v2281, %v2289
        %v2291 = vadd.f32 %v2290, 1.1283791
        %v2292 = vmul.f32 %v1990, %v2291
        %v2293 = vmul.f32 %v2281, 3.8918573e-05
        %v2294 = vadd.f32 %v2293, 0.001143296
        %v2295 = vmul.f32 %v2281, %v2294
        %v2296 = vadd.f32 %v2295, 0.014752088
        %v2297 = vmul.f32 %v2281, %v2296
        %v2298 = vadd.f32 %v2297, 0.112945676
        %v2299 = vmul.f32 %v2281, %v2298
        %v2300 = vadd.f32 %v2299, 0.4994258
        %v2301 = vmul.f32 %v2281, %v2300
        %v2302 = vadd.f32 %v2301, 1.0
        %v2303 = vrcp.pop %v2302
        %v2304 = vmul.f32 %v2302, %v2303
        %v2305 = vsub.f32 1.0, %v2304
        %v2306 = vmul.f32 %v2303, %v2305
        %v2307 = vadd.f32 %v2303, %v2306
        %vm2308 = vweird.f32 %v2302
        %vm2309 = vweird.f32 %v2303
        %vm2310 = vmor %vm2308, %vm2309
        %v2311 = vsel %vm2310, %v2303, %v2307
        %v2312 = vand.u32 2147483647, %v2302
        %vm2313 = vcmp.eq.f32.partialorder %v2312, 8.507059e+37
        %v2314 = vand.u32 %v2302, 2147483648
        %v2315 = vor.u32 1.1754944e-38, %v2314
        %v2316 = vsel %vm2313, %v2315, %v2311
        %v2317 = vmul.f32 %v2292, %v2316
        %v2318 = vmin.f32 %v2317, 1.0
        %v2319 = vmax.f32 %v2318, -1.0
        %v2320 = vadd.f32 %v2039, 1.0
        %v2321 = vadd.f32 %v2079, 1.0
        %v2322 = vadd.f32 %v2119, 1.0
        %v2323 = vadd.f32 %v2159, 1.0
        %v2324 = vadd.f32 %v2199, 1.0
        %v2325 = vadd.f32 %v2239, 1.0
        %v2326 = vadd.f32 %v2279, 1.0
        %v2327 = vadd.f32 %v2319, 1.0
        %v2328 = vmul.f32 %v1992, %v2320
        %v2329 = vmul.f32 %v1993, %v2321
        %v2330 = vmul.f32 %v1994, %v2322
        %v2331 = vmul.f32 %v1995, %v2323
        %v2332 = vmul.f32 %v1996, %v2324
        %v2333 = vmul.f32 %v1997, %v2325
        %v2334 = vmul.f32 %v1998, %v2326
        %v2335 = vmul.f32 %v1999, %v2327
        %v2336 = vld [vmem:[%s11] sm:$0xff]
        %v2337 = vld [vmem:[%s11 + $0x8] sm:$0xff]
        %v2338 = vld [vmem:[%s11 + $0x10] sm:$0xff]
        %v2339 = vld [vmem:[%s11 + $0x18] sm:$0xff]
        %v2340 = vld [vmem:[%s12] sm:$0xff]
        %v2341 = vld [vmem:[%s12 + $0x8] sm:$0xff]
        %v2342 = vld [vmem:[%s12 + $0x10] sm:$0xff]
        %v2343 = vld [vmem:[%s12 + $0x18] sm:$0xff]
        %2345 = vset.pattern.permute.xlu0 0
        %2346 = vperm.xlu0 %2345, %v2340
        %v2347 = vpop.permute.xlu0 %2346
        %2350 = vset.pattern.permute.xlu0 0
        %2351 = vperm.xlu0 %2350, %v2341
        %v2352 = vpop.permute.xlu0 %2351
        %2355 = vset.pattern.permute.xlu0 0
        %2356 = vperm.xlu0 %2355, %v2342
        %v2357 = vpop.permute.xlu0 %2356
        %2360 = vset.pattern.permute.xlu0 0
        %2361 = vperm.xlu0 %2360, %v2343
        %v2362 = vpop.permute.xlu0 %2361
        %v2365 = vsel %vm935, %v2336, 0
        %v2368 = vsel %vm935, %v2337, 0
        %v2371 = vsel %vm935, %v2338, 0
        %v2374 = vsel %vm935, %v2339, 0
        %2376 = vmatpush.msra.mxu0 0.0
        %2377 = vmatpush.msra.mxu0 0.0
        %2378 = vmatpush.msra.mxu0 0.0
        %2379 = vmatpush.msra.mxu0 0.0
        %2380 = vmatpush.msra.mxu0 0.0
        %2381 = vmatpush.msra.mxu0 0.0
        %2382 = vmatpush.msra.mxu0 0.0
        %2383 = vmatpush.msra.mxu0 0.0
        %2384 = vmatpush.msra.mxu0 0.0
        %2385 = vmatpush.msra.mxu0 0.0
        %2386 = vmatpush.msra.mxu0 0.0
        %2387 = vmatpush.msra.mxu0 0.0
        %2388 = vmatpush.msra.mxu0 %v2334
        %2389 = vmatpush.msra.mxu0 %v2332
        %2390 = vmatpush.msra.mxu0 %v2330
        %2391 = vmatpush.msra.mxu0 %v2328
        %2392 = vmatmul.f32.gmra.mxu0 %v2365
        %v2393 = vpop.f32.mrf.mxu0
        %v2394 = vadd.f32 %v2347, %v2393
        %2395 = vmatmul.f32.gmra.mxu0 %v2368
        %v2396 = vpop.f32.mrf.mxu0
        %v2397 = vadd.f32 %v2352, %v2396
        %2398 = vmatmul.f32.gmra.mxu0 %v2371
        %v2399 = vpop.f32.mrf.mxu0
        %v2400 = vadd.f32 %v2357, %v2399
        %2401 = vmatmul.f32.gmra.mxu0 %v2374
        %v2402 = vpop.f32.mrf.mxu0
        %v2403 = vadd.f32 %v2362, %v2402
        %2404 = vdwg.mxu0
        %2405 = vmatpush.msra.mxu0 0.0
        %2406 = vmatpush.msra.mxu0 0.0
        %2407 = vmatpush.msra.mxu0 0.0
        %2408 = vmatpush.msra.mxu0 0.0
        %2409 = vmatpush.msra.mxu0 0.0
        %2410 = vmatpush.msra.mxu0 0.0
        %2411 = vmatpush.msra.mxu0 0.0
        %2412 = vmatpush.msra.mxu0 0.0
        %2413 = vmatpush.msra.mxu0 0.0
        %2414 = vmatpush.msra.mxu0 0.0
        %2415 = vmatpush.msra.mxu0 0.0
        %2416 = vmatpush.msra.mxu0 0.0
        %2417 = vmatpush.msra.mxu0 %v2335
        %2418 = vmatpush.msra.mxu0 %v2333
        %2419 = vmatpush.msra.mxu0 %v2331
        %2420 = vmatpush.msra.mxu0 %v2329
        %2421 = vmatmul.f32.gmra.mxu0 %v2365
        %v2422 = vpop.f32.mrf.mxu0
        %v2423 = vadd.f32 %v2347, %v2422
        %2424 = vmatmul.f32.gmra.mxu0 %v2368
        %v2425 = vpop.f32.mrf.mxu0
        %v2426 = vadd.f32 %v2352, %v2425
        %2427 = vmatmul.f32.gmra.mxu0 %v2371
        %v2428 = vpop.f32.mrf.mxu0
        %v2429 = vadd.f32 %v2357, %v2428
        %2430 = vmatmul.f32.gmra.mxu0 %v2374
        %v2431 = vpop.f32.mrf.mxu0
        %v2432 = vadd.f32 %v2362, %v2431
        %2433 = vdwg.mxu0
        %v2434 = vmul.f32 %v2394, 0.70710677
        %v2435 = vmul.f32 %v2423, 0.70710677
        %v2436 = vmul.f32 %v2397, 0.70710677
        %v2437 = vmul.f32 %v2426, 0.70710677
        %v2438 = vmul.f32 %v2400, 0.70710677
        %v2439 = vmul.f32 %v2429, 0.70710677
        %v2440 = vmul.f32 %v2403, 0.70710677
        %v2441 = vmul.f32 %v2432, 0.70710677
        %v2442 = vmul.f32 %v2394, %v2394
        %v2443 = vmin.f32 16.0, %v2442
        %v2444 = vmul.f32 %v2443, 2.1237322e-06
        %v2445 = vadd.f32 %v2444, 0.00028619796
        %v2446 = vmul.f32 %v2443, %v2445
        %v2447 = vadd.f32 %v2446, 0.0036580483
        %v2448 = vmul.f32 %v2443, %v2447
        %v2449 = vadd.f32 %v2448, 0.05243302
        %v2450 = vmul.f32 %v2443, %v2449
        %v2451 = vadd.f32 %v2450, 0.18741608
        %v2452 = vmul.f32 %v2443, %v2451
        %v2453 = vadd.f32 %v2452, 1.1283791
        %v2454 = vmul.f32 %v2394, %v2453
        %v2455 = vmul.f32 %v2443, 3.8918573e-05
        %v2456 = vadd.f32 %v2455, 0.001143296
        %v2457 = vmul.f32 %v2443, %v2456
        %v2458 = vadd.f32 %v2457, 0.014752088
        %v2459 = vmul.f32 %v2443, %v2458
        %v2460 = vadd.f32 %v2459, 0.112945676
        %v2461 = vmul.f32 %v2443, %v2460
        %v2462 = vadd.f32 %v2461, 0.4994258
        %v2463 = vmul.f32 %v2443, %v2462
        %v2464 = vadd.f32 %v2463, 1.0
        %v2465 = vrcp.pop %v2464
        %v2466 = vmul.f32 %v2464, %v2465
        %v2467 = vsub.f32 1.0, %v2466
        %v2468 = vmul.f32 %v2465, %v2467
        %v2469 = vadd.f32 %v2465, %v2468
        %vm2470 = vweird.f32 %v2464
        %vm2471 = vweird.f32 %v2465
        %vm2472 = vmor %vm2470, %vm2471
        %v2473 = vsel %vm2472, %v2465, %v2469
        %v2474 = vand.u32 2147483647, %v2464
        %vm2475 = vcmp.eq.f32.partialorder %v2474, 8.507059e+37
        %v2476 = vand.u32 %v2464, 2147483648
        %v2477 = vor.u32 1.1754944e-38, %v2476
        %v2478 = vsel %vm2475, %v2477, %v2473
        %v2479 = vmul.f32 %v2454, %v2478
        %v2480 = vmin.f32 %v2479, 1.0
        %v2481 = vmax.f32 %v2480, -1.0
        %v2482 = vmul.f32 %v2423, %v2423
        %v2483 = vmin.f32 16.0, %v2482
        %v2484 = vmul.f32 %v2483, 2.1237322e-06
        %v2485 = vadd.f32 %v2484, 0.00028619796
        %v2486 = vmul.f32 %v2483, %v2485
        %v2487 = vadd.f32 %v2486, 0.0036580483
        %v2488 = vmul.f32 %v2483, %v2487
        %v2489 = vadd.f32 %v2488, 0.05243302
        %v2490 = vmul.f32 %v2483, %v2489
        %v2491 = vadd.f32 %v2490, 0.18741608
        %v2492 = vmul.f32 %v2483, %v2491
        %v2493 = vadd.f32 %v2492, 1.1283791
        %v2494 = vmul.f32 %v2423, %v2493
        %v2495 = vmul.f32 %v2483, 3.8918573e-05
        %v2496 = vadd.f32 %v2495, 0.001143296
        %v2497 = vmul.f32 %v2483, %v2496
        %v2498 = vadd.f32 %v2497, 0.014752088
        %v2499 = vmul.f32 %v2483, %v2498
        %v2500 = vadd.f32 %v2499, 0.112945676
        %v2501 = vmul.f32 %v2483, %v2500
        %v2502 = vadd.f32 %v2501, 0.4994258
        %v2503 = vmul.f32 %v2483, %v2502
        %v2504 = vadd.f32 %v2503, 1.0
        %v2505 = vrcp.pop %v2504
        %v2506 = vmul.f32 %v2504, %v2505
        %v2507 = vsub.f32 1.0, %v2506
        %v2508 = vmul.f32 %v2505, %v2507
        %v2509 = vadd.f32 %v2505, %v2508
        %vm2510 = vweird.f32 %v2504
        %vm2511 = vweird.f32 %v2505
        %vm2512 = vmor %vm2510, %vm2511
        %v2513 = vsel %vm2512, %v2505, %v2509
        %v2514 = vand.u32 2147483647, %v2504
        %vm2515 = vcmp.eq.f32.partialorder %v2514, 8.507059e+37
        %v2516 = vand.u32 %v2504, 2147483648
        %v2517 = vor.u32 1.1754944e-38, %v2516
        %v2518 = vsel %vm2515, %v2517, %v2513
        %v2519 = vmul.f32 %v2494, %v2518
        %v2520 = vmin.f32 %v2519, 1.0
        %v2521 = vmax.f32 %v2520, -1.0
        %v2522 = vmul.f32 %v2397, %v2397
        %v2523 = vmin.f32 16.0, %v2522
        %v2524 = vmul.f32 %v2523, 2.1237322e-06
        %v2525 = vadd.f32 %v2524, 0.00028619796
        %v2526 = vmul.f32 %v2523, %v2525
        %v2527 = vadd.f32 %v2526, 0.0036580483
        %v2528 = vmul.f32 %v2523, %v2527
        %v2529 = vadd.f32 %v2528, 0.05243302
        %v2530 = vmul.f32 %v2523, %v2529
        %v2531 = vadd.f32 %v2530, 0.18741608
        %v2532 = vmul.f32 %v2523, %v2531
        %v2533 = vadd.f32 %v2532, 1.1283791
        %v2534 = vmul.f32 %v2397, %v2533
        %v2535 = vmul.f32 %v2523, 3.8918573e-05
        %v2536 = vadd.f32 %v2535, 0.001143296
        %v2537 = vmul.f32 %v2523, %v2536
        %v2538 = vadd.f32 %v2537, 0.014752088
        %v2539 = vmul.f32 %v2523, %v2538
        %v2540 = vadd.f32 %v2539, 0.112945676
        %v2541 = vmul.f32 %v2523, %v2540
        %v2542 = vadd.f32 %v2541, 0.4994258
        %v2543 = vmul.f32 %v2523, %v2542
        %v2544 = vadd.f32 %v2543, 1.0
        %v2545 = vrcp.pop %v2544
        %v2546 = vmul.f32 %v2544, %v2545
        %v2547 = vsub.f32 1.0, %v2546
        %v2548 = vmul.f32 %v2545, %v2547
        %v2549 = vadd.f32 %v2545, %v2548
        %vm2550 = vweird.f32 %v2544
        %vm2551 = vweird.f32 %v2545
        %vm2552 = vmor %vm2550, %vm2551
        %v2553 = vsel %vm2552, %v2545, %v2549
        %v2554 = vand.u32 2147483647, %v2544
        %vm2555 = vcmp.eq.f32.partialorder %v2554, 8.507059e+37
        %v2556 = vand.u32 %v2544, 2147483648
        %v2557 = vor.u32 1.1754944e-38, %v2556
        %v2558 = vsel %vm2555, %v2557, %v2553
        %v2559 = vmul.f32 %v2534, %v2558
        %v2560 = vmin.f32 %v2559, 1.0
        %v2561 = vmax.f32 %v2560, -1.0
        %v2562 = vmul.f32 %v2426, %v2426
        %v2563 = vmin.f32 16.0, %v2562
        %v2564 = vmul.f32 %v2563, 2.1237322e-06
        %v2565 = vadd.f32 %v2564, 0.00028619796
        %v2566 = vmul.f32 %v2563, %v2565
        %v2567 = vadd.f32 %v2566, 0.0036580483
        %v2568 = vmul.f32 %v2563, %v2567
        %v2569 = vadd.f32 %v2568, 0.05243302
        %v2570 = vmul.f32 %v2563, %v2569
        %v2571 = vadd.f32 %v2570, 0.18741608
        %v2572 = vmul.f32 %v2563, %v2571
        %v2573 = vadd.f32 %v2572, 1.1283791
        %v2574 = vmul.f32 %v2426, %v2573
        %v2575 = vmul.f32 %v2563, 3.8918573e-05
        %v2576 = vadd.f32 %v2575, 0.001143296
        %v2577 = vmul.f32 %v2563, %v2576
        %v2578 = vadd.f32 %v2577, 0.014752088
        %v2579 = vmul.f32 %v2563, %v2578
        %v2580 = vadd.f32 %v2579, 0.112945676
        %v2581 = vmul.f32 %v2563, %v2580
        %v2582 = vadd.f32 %v2581, 0.4994258
        %v2583 = vmul.f32 %v2563, %v2582
        %v2584 = vadd.f32 %v2583, 1.0
        %v2585 = vrcp.pop %v2584
        %v2586 = vmul.f32 %v2584, %v2585
        %v2587 = vsub.f32 1.0, %v2586
        %v2588 = vmul.f32 %v2585, %v2587
        %v2589 = vadd.f32 %v2585, %v2588
        %vm2590 = vweird.f32 %v2584
        %vm2591 = vweird.f32 %v2585
        %vm2592 = vmor %vm2590, %vm2591
        %v2593 = vsel %vm2592, %v2585, %v2589
        %v2594 = vand.u32 2147483647, %v2584
        %vm2595 = vcmp.eq.f32.partialorder %v2594, 8.507059e+37
        %v2596 = vand.u32 %v2584, 2147483648
        %v2597 = vor.u32 1.1754944e-38, %v2596
        %v2598 = vsel %vm2595, %v2597, %v2593
        %v2599 = vmul.f32 %v2574, %v2598
        %v2600 = vmin.f32 %v2599, 1.0
        %v2601 = vmax.f32 %v2600, -1.0
        %v2602 = vmul.f32 %v2400, %v2400
        %v2603 = vmin.f32 16.0, %v2602
        %v2604 = vmul.f32 %v2603, 2.1237322e-06
        %v2605 = vadd.f32 %v2604, 0.00028619796
        %v2606 = vmul.f32 %v2603, %v2605
        %v2607 = vadd.f32 %v2606, 0.0036580483
        %v2608 = vmul.f32 %v2603, %v2607
        %v2609 = vadd.f32 %v2608, 0.05243302
        %v2610 = vmul.f32 %v2603, %v2609
        %v2611 = vadd.f32 %v2610, 0.18741608
        %v2612 = vmul.f32 %v2603, %v2611
        %v2613 = vadd.f32 %v2612, 1.1283791
        %v2614 = vmul.f32 %v2400, %v2613
        %v2615 = vmul.f32 %v2603, 3.8918573e-05
        %v2616 = vadd.f32 %v2615, 0.001143296
        %v2617 = vmul.f32 %v2603, %v2616
        %v2618 = vadd.f32 %v2617, 0.014752088
        %v2619 = vmul.f32 %v2603, %v2618
        %v2620 = vadd.f32 %v2619, 0.112945676
        %v2621 = vmul.f32 %v2603, %v2620
        %v2622 = vadd.f32 %v2621, 0.4994258
        %v2623 = vmul.f32 %v2603, %v2622
        %v2624 = vadd.f32 %v2623, 1.0
        %v2625 = vrcp.pop %v2624
        %v2626 = vmul.f32 %v2624, %v2625
        %v2627 = vsub.f32 1.0, %v2626
        %v2628 = vmul.f32 %v2625, %v2627
        %v2629 = vadd.f32 %v2625, %v2628
        %vm2630 = vweird.f32 %v2624
        %vm2631 = vweird.f32 %v2625
        %vm2632 = vmor %vm2630, %vm2631
        %v2633 = vsel %vm2632, %v2625, %v2629
        %v2634 = vand.u32 2147483647, %v2624
        %vm2635 = vcmp.eq.f32.partialorder %v2634, 8.507059e+37
        %v2636 = vand.u32 %v2624, 2147483648
        %v2637 = vor.u32 1.1754944e-38, %v2636
        %v2638 = vsel %vm2635, %v2637, %v2633
        %v2639 = vmul.f32 %v2614, %v2638
        %v2640 = vmin.f32 %v2639, 1.0
        %v2641 = vmax.f32 %v2640, -1.0
        %v2642 = vmul.f32 %v2429, %v2429
        %v2643 = vmin.f32 16.0, %v2642
        %v2644 = vmul.f32 %v2643, 2.1237322e-06
        %v2645 = vadd.f32 %v2644, 0.00028619796
        %v2646 = vmul.f32 %v2643, %v2645
        %v2647 = vadd.f32 %v2646, 0.0036580483
        %v2648 = vmul.f32 %v2643, %v2647
        %v2649 = vadd.f32 %v2648, 0.05243302
        %v2650 = vmul.f32 %v2643, %v2649
        %v2651 = vadd.f32 %v2650, 0.18741608
        %v2652 = vmul.f32 %v2643, %v2651
        %v2653 = vadd.f32 %v2652, 1.1283791
        %v2654 = vmul.f32 %v2429, %v2653
        %v2655 = vmul.f32 %v2643, 3.8918573e-05
        %v2656 = vadd.f32 %v2655, 0.001143296
        %v2657 = vmul.f32 %v2643, %v2656
        %v2658 = vadd.f32 %v2657, 0.014752088
        %v2659 = vmul.f32 %v2643, %v2658
        %v2660 = vadd.f32 %v2659, 0.112945676
        %v2661 = vmul.f32 %v2643, %v2660
        %v2662 = vadd.f32 %v2661, 0.4994258
        %v2663 = vmul.f32 %v2643, %v2662
        %v2664 = vadd.f32 %v2663, 1.0
        %v2665 = vrcp.pop %v2664
        %v2666 = vmul.f32 %v2664, %v2665
        %v2667 = vsub.f32 1.0, %v2666
        %v2668 = vmul.f32 %v2665, %v2667
        %v2669 = vadd.f32 %v2665, %v2668
        %vm2670 = vweird.f32 %v2664
        %vm2671 = vweird.f32 %v2665
        %vm2672 = vmor %vm2670, %vm2671
        %v2673 = vsel %vm2672, %v2665, %v2669
        %v2674 = vand.u32 2147483647, %v2664
        %vm2675 = vcmp.eq.f32.partialorder %v2674, 8.507059e+37
        %v2676 = vand.u32 %v2664, 2147483648
        %v2677 = vor.u32 1.1754944e-38, %v2676
        %v2678 = vsel %vm2675, %v2677, %v2673
        %v2679 = vmul.f32 %v2654, %v2678
        %v2680 = vmin.f32 %v2679, 1.0
        %v2681 = vmax.f32 %v2680, -1.0
        %v2682 = vmul.f32 %v2403, %v2403
        %v2683 = vmin.f32 16.0, %v2682
        %v2684 = vmul.f32 %v2683, 2.1237322e-06
        %v2685 = vadd.f32 %v2684, 0.00028619796
        %v2686 = vmul.f32 %v2683, %v2685
        %v2687 = vadd.f32 %v2686, 0.0036580483
        %v2688 = vmul.f32 %v2683, %v2687
        %v2689 = vadd.f32 %v2688, 0.05243302
        %v2690 = vmul.f32 %v2683, %v2689
        %v2691 = vadd.f32 %v2690, 0.18741608
        %v2692 = vmul.f32 %v2683, %v2691
        %v2693 = vadd.f32 %v2692, 1.1283791
        %v2694 = vmul.f32 %v2403, %v2693
        %v2695 = vmul.f32 %v2683, 3.8918573e-05
        %v2696 = vadd.f32 %v2695, 0.001143296
        %v2697 = vmul.f32 %v2683, %v2696
        %v2698 = vadd.f32 %v2697, 0.014752088
        %v2699 = vmul.f32 %v2683, %v2698
        %v2700 = vadd.f32 %v2699, 0.112945676
        %v2701 = vmul.f32 %v2683, %v2700
        %v2702 = vadd.f32 %v2701, 0.4994258
        %v2703 = vmul.f32 %v2683, %v2702
        %v2704 = vadd.f32 %v2703, 1.0
        %v2705 = vrcp.pop %v2704
        %v2706 = vmul.f32 %v2704, %v2705
        %v2707 = vsub.f32 1.0, %v2706
        %v2708 = vmul.f32 %v2705, %v2707
        %v2709 = vadd.f32 %v2705, %v2708
        %vm2710 = vweird.f32 %v2704
        %vm2711 = vweird.f32 %v2705
        %vm2712 = vmor %vm2710, %vm2711
        %v2713 = vsel %vm2712, %v2705, %v2709
        %v2714 = vand.u32 2147483647, %v2704
        %vm2715 = vcmp.eq.f32.partialorder %v2714, 8.507059e+37
        %v2716 = vand.u32 %v2704, 2147483648
        %v2717 = vor.u32 1.1754944e-38, %v2716
        %v2718 = vsel %vm2715, %v2717, %v2713
        %v2719 = vmul.f32 %v2694, %v2718
        %v2720 = vmin.f32 %v2719, 1.0
        %v2721 = vmax.f32 %v2720, -1.0
        %v2722 = vmul.f32 %v2432, %v2432
        %v2723 = vmin.f32 16.0, %v2722
        %v2724 = vmul.f32 %v2723, 2.1237322e-06
        %v2725 = vadd.f32 %v2724, 0.00028619796
        %v2726 = vmul.f32 %v2723, %v2725
        %v2727 = vadd.f32 %v2726, 0.0036580483
        %v2728 = vmul.f32 %v2723, %v2727
        %v2729 = vadd.f32 %v2728, 0.05243302
        %v2730 = vmul.f32 %v2723, %v2729
        %v2731 = vadd.f32 %v2730, 0.18741608
        %v2732 = vmul.f32 %v2723, %v2731
        %v2733 = vadd.f32 %v2732, 1.1283791
        %v2734 = vmul.f32 %v2432, %v2733
        %v2735 = vmul.f32 %v2723, 3.8918573e-05
        %v2736 = vadd.f32 %v2735, 0.001143296
        %v2737 = vmul.f32 %v2723, %v2736
        %v2738 = vadd.f32 %v2737, 0.014752088
        %v2739 = vmul.f32 %v2723, %v2738
        %v2740 = vadd.f32 %v2739, 0.112945676
        %v2741 = vmul.f32 %v2723, %v2740
        %v2742 = vadd.f32 %v2741, 0.4994258
        %v2743 = vmul.f32 %v2723, %v2742
        %v2744 = vadd.f32 %v2743, 1.0
        %v2745 = vrcp.pop %v2744
        %v2746 = vmul.f32 %v2744, %v2745
        %v2747 = vsub.f32 1.0, %v2746
        %v2748 = vmul.f32 %v2745, %v2747
        %v2749 = vadd.f32 %v2745, %v2748
        %vm2750 = vweird.f32 %v2744
        %vm2751 = vweird.f32 %v2745
        %vm2752 = vmor %vm2750, %vm2751
        %v2753 = vsel %vm2752, %v2745, %v2749
        %v2754 = vand.u32 2147483647, %v2744
        %vm2755 = vcmp.eq.f32.partialorder %v2754, 8.507059e+37
        %v2756 = vand.u32 %v2744, 2147483648
        %v2757 = vor.u32 1.1754944e-38, %v2756
        %v2758 = vsel %vm2755, %v2757, %v2753
        %v2759 = vmul.f32 %v2734, %v2758
        %v2760 = vmin.f32 %v2759, 1.0
        %v2761 = vmax.f32 %v2760, -1.0
        %v2762 = vadd.f32 %v2481, 1.0
        %v2763 = vadd.f32 %v2521, 1.0
        %v2764 = vadd.f32 %v2561, 1.0
        %v2765 = vadd.f32 %v2601, 1.0
        %v2766 = vadd.f32 %v2641, 1.0
        %v2767 = vadd.f32 %v2681, 1.0
        %v2768 = vadd.f32 %v2721, 1.0
        %v2769 = vadd.f32 %v2761, 1.0
        %v2770 = vmul.f32 %v2434, %v2762
        %v2771 = vmul.f32 %v2435, %v2763
        %v2772 = vmul.f32 %v2436, %v2764
        %v2773 = vmul.f32 %v2437, %v2765
        %v2774 = vmul.f32 %v2438, %v2766
        %v2775 = vmul.f32 %v2439, %v2767
        %v2776 = vmul.f32 %v2440, %v2768
        %v2777 = vmul.f32 %v2441, %v2769
        %v2778 = vld [vmem:[%s13] sm:$0x1]
        %v2779 = vld [vmem:[#allocation2] sm:$0x1]
        %2781 = vset.pattern.permute.xlu0 0
        %2782 = vperm.xlu0 %2781, %v2779
        %v2783 = vpop.permute.xlu0 %2782
        %v2785 = vperm.slane %v2783, 0
        %v2787 = vsel %vm935, %v2778, 0
        %2789 = vmatpush.msra.mxu0 0.0
        %2790 = vmatpush.msra.mxu0 0.0
        %2791 = vmatpush.msra.mxu0 0.0
        %2792 = vmatpush.msra.mxu0 0.0
        %2793 = vmatpush.msra.mxu0 0.0
        %2794 = vmatpush.msra.mxu0 0.0
        %2795 = vmatpush.msra.mxu0 0.0
        %2796 = vmatpush.msra.mxu0 0.0
        %2797 = vmatpush.msra.mxu0 0.0
        %2798 = vmatpush.msra.mxu0 0.0
        %2799 = vmatpush.msra.mxu0 0.0
        %2800 = vmatpush.msra.mxu0 0.0
        %2801 = vmatpush.msra.mxu0 %v2776
        %2802 = vmatpush.msra.mxu0 %v2774
        %2803 = vmatpush.msra.mxu0 %v2772
        %2804 = vmatpush.msra.mxu0 %v2770
        %2805 = vmatmul.f32.gmra.mxu0 %v2787
        %v2806 = vpop.f32.mrf.mxu0
        %v2807 = vadd.f32 %v2785, %v2806
        %2808 = vdwg.mxu0
        %2809 = vmatpush.msra.mxu0 0.0
        %2810 = vmatpush.msra.mxu0 0.0
        %2811 = vmatpush.msra.mxu0 0.0
        %2812 = vmatpush.msra.mxu0 0.0
        %2813 = vmatpush.msra.mxu0 0.0
        %2814 = vmatpush.msra.mxu0 0.0
        %2815 = vmatpush.msra.mxu0 0.0
        %2816 = vmatpush.msra.mxu0 0.0
        %2817 = vmatpush.msra.mxu0 0.0
        %2818 = vmatpush.msra.mxu0 0.0
        %2819 = vmatpush.msra.mxu0 0.0
        %2820 = vmatpush.msra.mxu0 0.0
        %2821 = vmatpush.msra.mxu0 %v2777
        %2822 = vmatpush.msra.mxu0 %v2775
        %2823 = vmatpush.msra.mxu0 %v2773
        %2824 = vmatpush.msra.mxu0 %v2771
        %2825 = vmatmul.f32.gmra.mxu0 %v2787
        %v2826 = vpop.f32.mrf.mxu0
        %v2827 = vadd.f32 %v2785, %v2826
        %2828 = vdwg.mxu0
        %v2831 = vrot.slane %v2827, 7
        %vm2832 = vcmask 1040384
        %v2833 = vsel %vm2832, %v2807, %v2831
        %v2835 = vlaneseq
        %vm2836 = vcmp.ge.s32.totalorder %v2835, 0
        %vm2837 = vcmp.lt.s32.totalorder %v2835, 256
        %vm2838 = vmand %vm2836, %vm2837
        %2839 = vst.msk [vmem:[%s490] sm:$0x3] %vm2838, %v2833
        %s2840 = sand.u32 %s359, 1
        %s2841 = scalar_lea.sflag [#allocation4], %s2840
        %s2842 = sand.u32 %s359, 1
        %s2843 = smul.addr %s2842, 2
        %s2844 = scalar_lea.vmem [#allocation3], %s2843
        // Predicated region
        $region81: #{tpu_custom_call.1} parent=79 // pred_check
          %p2845 = pneg %p369
        $region82: #{tpu_custom_call.1} parent=79 // pred_check_branch
          %2847 = sbr.rel (%p2845) target = $region84
        $region83: #{tpu_custom_call.1} parent=79 // pred_region
          %s2848 = smul.u32 2, %s31
          %2850 = vsyncadd %s2841, 0
          %s2851 = scalar_lea.hbm %s15, %s2848
          %s2853 = sshll.u32 %s2844, 4
          %s2854 = int_to_ptr.vmem [resolvable:$true] %s2853
          %s2855 = sshll.u32 %s2851, 4
          %s2856 = int_to_ptr.hbm [resolvable:$true] %s2855
          %2858 = dma.vmem_to_hbm [thread:$0]  %s2854, 32, %s2856, %s2841
        $region84: #{tpu_custom_call.1} parent=79 // pred_fallthru
          _
      $region80: #{tpu_custom_call.1} parent=5 // pred_fallthru
        _
      %p2859 = scmp.le.s32.totalorder 2, %s26
      // Predicated region
      $region85: #{tpu_custom_call.1} parent=5 // pred_check
        %p2860 = pneg %p2859
      $region86: #{tpu_custom_call.1} parent=5 // pred_check_branch
        %2862 = sbr.rel (%p2860) target = $region88
      $region87: #{tpu_custom_call.1} parent=5 // pred_region
        %s2863 = ssub.s32 %s26, 2
        // Predicated region
        $region89: #{tpu_custom_call.1} parent=87 // pred_check
          %p2864 = pneg %p375
        $region90: #{tpu_custom_call.1} parent=87 // pred_check_branch
          %2866 = sbr.rel (%p2864) target = $region92
        $region91: #{tpu_custom_call.1} parent=87 // pred_region
          %s2867 = sand.u32 %s360, 1
          %s2868 = scalar_lea.sflag [#allocation4], %s2867
          %s2869 = sand.u32 %s360, 1
          %s2870 = smul.addr %s2869, 2
          %s2871 = scalar_lea.vmem [#allocation3], %s2870
          %2873 = dma.done %s2868, 32
        $region92: #{tpu_custom_call.1} parent=87 // pred_fallthru
          _
      $region88: #{tpu_custom_call.1} parent=5 // pred_fallthru
        _
    $region6: #{tpu_custom_call.1} parent=1 // loop_footer
      %s30 = sadd.s32 1, %s26
    $region7: #{tpu_custom_call.1} parent=1 // loop_footer_branch
      %25 = sbr.rel target = $region3
    $region8: #{tpu_custom_call.1} parent=1 // loop_exit
      _
    %2874 = vsyncpa [#allocation4], 1
    %s2875 = scalar_lea.sflag [#allocation4], 1
    %2876 = vsyncpa %s2875, 1

</llo_original>
